<compile_context>
chip_gen: v6e
topology: v6e:2x2x1
jax: 0.10.0
libtpu: 0.0.40
codegen_flags: <defaults>
</compile_context>

<pallas_src>
import jax
import jax.numpy as jnp
import numpy as np
from jax.experimental import pallas as pl
from jax.experimental.pallas import tpu as pltpu


# ----------------------------------------------------------------------------
# Fused kernel body: entire Actor forward on VMEM-resident data.
# ----------------------------------------------------------------------------
def _actor_fused_kernel(xp_ref, pos_ref, m1_ref, b1_ref, m2_ref, b2_ref,
                        w3_ref, b3_ref, wpos_ref, bpos_ref,
                        wd1a_ref, wd1b_ref, bd1_ref, wd2_ref, bd2_ref,
                        wmu_ref, bmu_ref, mu_ref):
    f32 = jnp.float32
    B = pos_ref.shape[0]
    OH1, OH2 = 13, 11          # conv1 / conv2 output heights for a 30x30 map

    # ---- explore_conv1 (5x5, stride 2) as 5 plain 2-D MXU matmuls -----------
    # xp layout: (h-parity, h2*B + b, t*30 + w); stride-2 height is absorbed by
    # the parity split, so every kernel-row tap is a static contiguous slab of
    # shape (13*B, T*30) and batch rides in the matmul M dimension.
    acc1 = jnp.zeros((OH1 * B, m1_ref.shape[2]), f32)
    for i in range(5):                                   # kernel row
        pi, qi = i % 2, i // 2
        lhs = xp_ref[pi, qi * B:(qi + OH1) * B, :]       # (13B, T*30)
        acc1 = acc1 + jnp.dot(lhs, m1_ref[i], preferred_element_type=f32)
    y1 = jnp.maximum(acc1 + b1_ref[...], 0.0)            # (13B, 4*13)

    # ---- explore_conv2 (3x3, stride 1) as 3 plain 2-D matmuls ----------------
    acc2 = jnp.zeros((OH2 * B, m2_ref.shape[2]), f32)
    for i in range(3):
        lhs = y1[i * B:(i + OH2) * B, :]                 # (11B, 4*13)
        acc2 = acc2 + jnp.dot(lhs, m2_ref[i], preferred_element_type=f32)
    y2 = jnp.maximum(acc2 + b2_ref[...], 0.0)            # (11B, 8*11)

    # ---- Flatten (NCHW order; weight rows pre-permuted) + explore_flat1 ------
    acc3 = jnp.zeros((B, w3_ref.shape[2]), f32)
    for oh in range(OH2):
        acc3 = acc3 + jnp.dot(y2[oh * B:(oh + 1) * B, :], w3_ref[oh],
                              preferred_element_type=f32)
    explore = jnp.maximum(acc3 + b3_ref[...], 0.0)       # (B, 64)

    # ---- position branch: per-timestep Linear(2,16) via block-diag weight ----
    pos = jnp.maximum(jnp.dot(pos_ref[...], wpos_ref[...],
                              preferred_element_type=f32) + bpos_ref[...], 0.0)

    # ---- input_dense1 on cat([pos, explore]) done as a split matmul ----------
    h = jnp.maximum(jnp.dot(pos, wd1a_ref[...], preferred_element_type=f32)
                    + jnp.dot(explore, wd1b_ref[...], preferred_element_type=f32)
                    + bd1_ref[...], 0.0)
    z = jnp.maximum(jnp.dot(h, wd2_ref[...], preferred_element_type=f32)
                    + bd2_ref[...], 0.0)                 # (B, 32)

    # ---- actor head: mu_goal = tanh(Linear(32 -> 2)) -------------------------
    mu_ref[...] = jnp.tanh(jnp.dot(z, wmu_ref[...], preferred_element_type=f32)
                           + bmu_ref[...])


# ----------------------------------------------------------------------------
# One-time weight preprocessing (pure weight relayouts, done outside the kernel)
# ----------------------------------------------------------------------------
def _width_conv_mats(w, stride, w_in):
    """Conv weight (OC, C, KH, KW) -> (KH, C*w_in, OC*w_out) width-Toeplitz mats:
    m[i, c*w_in + x, oc*w_out + ow] = w[oc, c, i, x - stride*ow] (if valid)."""
    OC, C, KH, KW = w.shape
    w_out = (w_in - KW) // stride + 1
    sel = np.zeros((KW, w_in, w_out), np.float32)
    for j in range(KW):
        for ow in range(w_out):
            sel[j, stride * ow + j, ow] = 1.0
    m = jnp.einsum('ocij,jxp->icxop', w.astype(jnp.float32), jnp.asarray(sel))
    return m.reshape(KH, C * w_in, OC * w_out)


def prepare_kernel_params(params, time_steps):
    T = time_steps
    wp, bp = params['pos_dense1']
    w1, b1 = params['explore_conv1']
    w2, b2 = params['explore_conv2']
    w3, b3 = params['explore_flat1']
    wd1, bd1 = params['input_dense1']
    wd2, bd2 = params['input_dense2']
    wmu, bmu = params['mu_goal']

    kp = {}
    # position Linear(2,16) applied per timestep == one block-diagonal matmul
    kp['wpos'] = jnp.kron(jnp.eye(T, dtype=jnp.float32), wp)     # (2T, 16T)
    kp['bpos'] = jnp.tile(bp, (1, T))                            # (1, 16T)
    # convs -> per-kernel-row width-Toeplitz matmul weights
    kp['m1'] = _width_conv_mats(w1, stride=2, w_in=30)           # (5, T*30, 52)
    kp['b1'] = jnp.repeat(b1, 13).reshape(1, 4 * 13)
    kp['m2'] = _width_conv_mats(w2, stride=1, w_in=13)           # (3, 52, 88)
    kp['b2'] = jnp.repeat(b2, 11).reshape(1, 8 * 11)
    # explore_flat1: permute rows from torch NCHW flatten order (oc, oh, ow)
    # to the kernel's per-output-row order (oh ; oc, ow)
    kp['w3'] = w3.reshape(8, 11, 11, 64).transpose(1, 0, 2, 3).reshape(11, 88, 64)
    kp['b3'] = b3
    # input_dense1 split into the pos / explore halves of the concat
    kp['wd1a'] = wd1[:16 * T]
    kp['wd1b'] = wd1[16 * T:]
    kp['bd1'] = bd1
    kp['wd2'], kp['bd2'] = wd2, bd2
    kp['wmu'], kp['bmu'] = wmu, bmu
    kp['log_std'] = params['log_std']
    return kp


# ----------------------------------------------------------------------------
# Forward: cheap input relayout + single fused pallas_call
# ----------------------------------------------------------------------------
@jax.jit
def actor_forward(kp, exploration_map, position):
    B, T, H, W = exploration_map.shape
    assert (H, W) == (30, 30), "module is fixed to 30x30 maps"
    # xp[ph, h2*B + b, t*W + w] = exploration_map[b, t, 2*h2 + ph, w]
    xp = exploration_map.reshape(B, T, H // 2, 2, W).transpose(3, 2, 0, 1, 4)
    xp = xp.reshape(2, (H // 2) * B, T * W).astype(jnp.float32)
    pos2 = position.reshape(B, T * 2).astype(jnp.float32)

    ops = (xp, pos2,
           kp['m1'], kp['b1'], kp['m2'], kp['b2'], kp['w3'], kp['b3'],
           kp['wpos'], kp['bpos'], kp['wd1a'], kp['wd1b'], kp['bd1'],
           kp['wd2'], kp['bd2'], kp['wmu'], kp['bmu'])

    mu_goal = pl.pallas_call(
        _actor_fused_kernel,
        out_shape=jax.ShapeDtypeStruct((B, 2), jnp.float32),
        in_specs=[pl.BlockSpec(memory_space=pltpu.MemorySpace.VMEM)] * len(ops),
        out_specs=pl.BlockSpec(memory_space=pltpu.MemorySpace.VMEM),
    )(*ops)

    # var = exp(log_std)^2 is input independent (2 scalars) -> plain JAX.
    std = jnp.exp(kp['log_std'])
    return mu_goal, std * std


# ----------------------------------------------------------------------------
# Parameter init (matches the module's layer sizes) and pure-JAX reference
# ----------------------------------------------------------------------------
def init_params(key, time_steps):
    T = time_steps
    ks = jax.random.split(key, 16)

    def dense(kw_, kb_, fi, fo):
        w = jax.random.normal(kw_, (fi, fo), jnp.float32) / jnp.sqrt(fi * 1.0)
        b = 0.01 * jax.random.normal(kb_, (1, fo), jnp.float32)
        return w, b

    def conv(kw_, kb_, oc, ic, kh, kw):
        fan_in = ic * kh * kw
        w = jax.random.normal(kw_, (oc, ic, kh, kw), jnp.float32) / jnp.sqrt(fan_in * 1.0)
        b = 0.01 * jax.random.normal(kb_, (oc,), jnp.float32)
        return w, b

    p = {}
    p['pos_dense1'] = dense(ks[0], ks[1], 2, 16)
    p['explore_conv1'] = conv(ks[2], ks[3], 4, T, 5, 5)
    p['explore_conv2'] = conv(ks[4], ks[5], 8, 4, 3, 3)
    p['explore_flat1'] = dense(ks[6], ks[7], 8 * 11 * 11, 64)
    p['input_dense1'] = dense(ks[8], ks[9], 16 * T + 64, 64)
    p['input_dense2'] = dense(ks[10], ks[11], 64, 32)
    p['mu_goal'] = dense(ks[12], ks[13], 32, 2)
    p['log_std'] = jnp.zeros((2,), jnp.float32)
    return p


def _conv2d(x, w, b, stride):
    out = jax.lax.conv_general_dilated(
        x, w, window_strides=(stride, stride), padding='VALID',
        dimension_numbers=('NCHW', 'OIHW', 'NCHW'))
    return out + b.reshape(1, -1, 1, 1)


def actor_reference(params, exploration_map, position):
    B = position.shape[0]
    wp, bp = params['pos_dense1']
    pos = jax.nn.relu(position @ wp + bp).reshape(B, -1)
    w1, b1 = params['explore_conv1']
    w2, b2 = params['explore_conv2']
    e = jax.nn.relu(_conv2d(exploration_map, w1, b1, 2))
    e = jax.nn.relu(_conv2d(e, w2, b2, 1))
    e = e.reshape(B, -1)
    w3, b3 = params['explore_flat1']
    e = jax.nn.relu(e @ w3 + b3)
    cat = jnp.concatenate([pos, e], axis=1)
    wd1, bd1 = params['input_dense1']
    h = jax.nn.relu(cat @ wd1 + bd1)
    wd2, bd2 = params['input_dense2']
    z = jax.nn.relu(h @ wd2 + bd2)
    wmu, bmu = params['mu_goal']
    mu = jnp.tanh(z @ wmu + bmu)
    var = jnp.exp(params['log_std']) ** 2
    return mu, var


if __name__ == "__main__":
    B, T, H, W = 2, 4, 30, 30   # 30x30 fixed by get_in_features_2d(30, 30)
    key = jax.random.PRNGKey(0)
    k_map, k_pos, k_par = jax.random.split(key, 3)

    exploration_map = jax.random.normal(k_map, (B, T, H, W), jnp.float32)
    position = jax.random.normal(k_pos, (B, T, 2), jnp.float32)
    params = init_params(k_par, T)
    kparams = prepare_kernel_params(params, T)

    mu, var = actor_forward(kparams, exploration_map, position)
    mu = jax.block_until_ready(mu)
    assert mu.shape == (B, 2) and mu.dtype == jnp.float32
    assert var.shape == (2,)

    mu_ref, var_ref = actor_reference(params, exploration_map, position)
    err = float(jnp.max(jnp.abs(mu - mu_ref)))
    assert err < 1e-3, f"kernel/reference mismatch: max|diff|={err}"
    assert float(jnp.max(jnp.abs(var - var_ref))) < 1e-5
    print("KERNEL_OK")
</pallas_src>

<mosaic_0001>
module attributes {stable_mosaic.version = 11 : i64} {
  func.func @_actor_fused_kernel(%arg0: memref<2x30x120xf32, #tpu.memory_space<vmem>>, %arg1: memref<2x8xf32, #tpu.memory_space<vmem>>, %arg2: memref<5x120x52xf32, #tpu.memory_space<vmem>>, %arg3: memref<1x52xf32, #tpu.memory_space<vmem>>, %arg4: memref<3x52x88xf32, #tpu.memory_space<vmem>>, %arg5: memref<1x88xf32, #tpu.memory_space<vmem>>, %arg6: memref<11x88x64xf32, #tpu.memory_space<vmem>>, %arg7: memref<1x64xf32, #tpu.memory_space<vmem>>, %arg8: memref<8x64xf32, #tpu.memory_space<vmem>>, %arg9: memref<1x64xf32, #tpu.memory_space<vmem>>, %arg10: memref<64x64xf32, #tpu.memory_space<vmem>>, %arg11: memref<64x64xf32, #tpu.memory_space<vmem>>, %arg12: memref<1x64xf32, #tpu.memory_space<vmem>>, %arg13: memref<64x32xf32, #tpu.memory_space<vmem>>, %arg14: memref<1x32xf32, #tpu.memory_space<vmem>>, %arg15: memref<32x2xf32, #tpu.memory_space<vmem>>, %arg16: memref<1x2xf32, #tpu.memory_space<vmem>>, %arg17: memref<2x2xf32, #tpu.memory_space<vmem>>) attributes {dimension_semantics = [], scalar_prefetch = 0 : i64, scratch_operands = 0 : i64, tpu.core_type = #tpu.core_type<tc>} {
    %cst = arith.constant 0.000000e+00 : f32
    %0 = vector.broadcast %cst : f32 to vector<26x52xf32>
    %c0 = arith.constant 0 : index
    %c0_0 = arith.constant 0 : index
    %c0_1 = arith.constant 0 : index
    %1 = vector.load %arg0[%c0, %c0_0, %c0_1] : memref<2x30x120xf32, #tpu.memory_space<vmem>>, vector<1x26x120xf32>
    %2 = vector.shape_cast %1 : vector<1x26x120xf32> to vector<26x120xf32>
    %c0_2 = arith.constant 0 : index
    %c0_3 = arith.constant 0 : index
    %c0_4 = arith.constant 0 : index
    %3 = vector.load %arg2[%c0_2, %c0_3, %c0_4] : memref<5x120x52xf32, #tpu.memory_space<vmem>>, vector<1x120x52xf32>
    %4 = vector.shape_cast %3 : vector<1x120x52xf32> to vector<120x52xf32>
    %cst_5 = arith.constant dense<0.000000e+00> : vector<26x52xf32>
    %5 = tpu.matmul %2, %4, %cst_5 {dimension_numbers = #tpu.dot_dimension_numbers<[1], [0], [0], [1], [0, 0, 1, 1], [], []>} : vector<26x120xf32>, vector<120x52xf32>, vector<26x52xf32> -> vector<26x52xf32>
    %6 = arith.addf %0, %5 : vector<26x52xf32>
    %c1 = arith.constant 1 : index
    %c0_6 = arith.constant 0 : index
    %c0_7 = arith.constant 0 : index
    %7 = vector.load %arg0[%c1, %c0_6, %c0_7] : memref<2x30x120xf32, #tpu.memory_space<vmem>>, vector<1x26x120xf32>
    %8 = vector.shape_cast %7 : vector<1x26x120xf32> to vector<26x120xf32>
    %c1_8 = arith.constant 1 : index
    %c0_9 = arith.constant 0 : index
    %c0_10 = arith.constant 0 : index
    %9 = vector.load %arg2[%c1_8, %c0_9, %c0_10] : memref<5x120x52xf32, #tpu.memory_space<vmem>>, vector<1x120x52xf32>
    %10 = vector.shape_cast %9 : vector<1x120x52xf32> to vector<120x52xf32>
    %cst_11 = arith.constant dense<0.000000e+00> : vector<26x52xf32>
    %11 = tpu.matmul %8, %10, %cst_11 {dimension_numbers = #tpu.dot_dimension_numbers<[1], [0], [0], [1], [0, 0, 1, 1], [], []>} : vector<26x120xf32>, vector<120x52xf32>, vector<26x52xf32> -> vector<26x52xf32>
    %12 = arith.addf %6, %11 : vector<26x52xf32>
    %c0_12 = arith.constant 0 : index
    %c2 = arith.constant 2 : index
    %c0_13 = arith.constant 0 : index
    %13 = vector.load %arg0[%c0_12, %c2, %c0_13] : memref<2x30x120xf32, #tpu.memory_space<vmem>>, vector<1x26x120xf32>
    %14 = vector.shape_cast %13 : vector<1x26x120xf32> to vector<26x120xf32>
    %c2_14 = arith.constant 2 : index
    %c0_15 = arith.constant 0 : index
    %c0_16 = arith.constant 0 : index
    %15 = vector.load %arg2[%c2_14, %c0_15, %c0_16] : memref<5x120x52xf32, #tpu.memory_space<vmem>>, vector<1x120x52xf32>
    %16 = vector.shape_cast %15 : vector<1x120x52xf32> to vector<120x52xf32>
    %cst_17 = arith.constant dense<0.000000e+00> : vector<26x52xf32>
    %17 = tpu.matmul %14, %16, %cst_17 {dimension_numbers = #tpu.dot_dimension_numbers<[1], [0], [0], [1], [0, 0, 1, 1], [], []>} : vector<26x120xf32>, vector<120x52xf32>, vector<26x52xf32> -> vector<26x52xf32>
    %18 = arith.addf %12, %17 : vector<26x52xf32>
    %c1_18 = arith.constant 1 : index
    %c2_19 = arith.constant 2 : index
    %c0_20 = arith.constant 0 : index
    %19 = vector.load %arg0[%c1_18, %c2_19, %c0_20] : memref<2x30x120xf32, #tpu.memory_space<vmem>>, vector<1x26x120xf32>
    %20 = vector.shape_cast %19 : vector<1x26x120xf32> to vector<26x120xf32>
    %c3 = arith.constant 3 : index
    %c0_21 = arith.constant 0 : index
    %c0_22 = arith.constant 0 : index
    %21 = vector.load %arg2[%c3, %c0_21, %c0_22] : memref<5x120x52xf32, #tpu.memory_space<vmem>>, vector<1x120x52xf32>
    %22 = vector.shape_cast %21 : vector<1x120x52xf32> to vector<120x52xf32>
    %cst_23 = arith.constant dense<0.000000e+00> : vector<26x52xf32>
    %23 = tpu.matmul %20, %22, %cst_23 {dimension_numbers = #tpu.dot_dimension_numbers<[1], [0], [0], [1], [0, 0, 1, 1], [], []>} : vector<26x120xf32>, vector<120x52xf32>, vector<26x52xf32> -> vector<26x52xf32>
    %24 = arith.addf %18, %23 : vector<26x52xf32>
    %c0_24 = arith.constant 0 : index
    %c4 = arith.constant 4 : index
    %c0_25 = arith.constant 0 : index
    %25 = vector.load %arg0[%c0_24, %c4, %c0_25] : memref<2x30x120xf32, #tpu.memory_space<vmem>>, vector<1x26x120xf32>
    %26 = vector.shape_cast %25 : vector<1x26x120xf32> to vector<26x120xf32>
    %c4_26 = arith.constant 4 : index
    %c0_27 = arith.constant 0 : index
    %c0_28 = arith.constant 0 : index
    %27 = vector.load %arg2[%c4_26, %c0_27, %c0_28] : memref<5x120x52xf32, #tpu.memory_space<vmem>>, vector<1x120x52xf32>
    %28 = vector.shape_cast %27 : vector<1x120x52xf32> to vector<120x52xf32>
    %cst_29 = arith.constant dense<0.000000e+00> : vector<26x52xf32>
    %29 = tpu.matmul %26, %28, %cst_29 {dimension_numbers = #tpu.dot_dimension_numbers<[1], [0], [0], [1], [0, 0, 1, 1], [], []>} : vector<26x120xf32>, vector<120x52xf32>, vector<26x52xf32> -> vector<26x52xf32>
    %30 = arith.addf %24, %29 : vector<26x52xf32>
    %c0_30 = arith.constant 0 : index
    %c0_31 = arith.constant 0 : index
    %31 = vector.load %arg3[%c0_30, %c0_31] : memref<1x52xf32, #tpu.memory_space<vmem>>, vector<1x52xf32>
    %32 = vector.broadcast %31 : vector<1x52xf32> to vector<26x52xf32>
    %33 = arith.addf %30, %32 : vector<26x52xf32>
    %cst_32 = arith.constant 0.000000e+00 : f32
    %34 = vector.broadcast %cst_32 : f32 to vector<26x52xf32>
    %35 = arith.maximumf %33, %34 : vector<26x52xf32>
    %cst_33 = arith.constant 0.000000e+00 : f32
    %36 = vector.broadcast %cst_33 : f32 to vector<22x88xf32>
    %37 = vector.extract_strided_slice %35 {offsets = [0, 0], sizes = [22, 52], strides = [1, 1]} : vector<26x52xf32> to vector<22x52xf32>
    %c0_34 = arith.constant 0 : index
    %c0_35 = arith.constant 0 : index
    %c0_36 = arith.constant 0 : index
    %38 = vector.load %arg4[%c0_34, %c0_35, %c0_36] : memref<3x52x88xf32, #tpu.memory_space<vmem>>, vector<1x52x88xf32>
    %39 = vector.shape_cast %38 : vector<1x52x88xf32> to vector<52x88xf32>
    %cst_37 = arith.constant dense<0.000000e+00> : vector<22x88xf32>
    %40 = tpu.matmul %37, %39, %cst_37 {dimension_numbers = #tpu.dot_dimension_numbers<[1], [0], [0], [1], [0, 0, 1, 1], [], []>} : vector<22x52xf32>, vector<52x88xf32>, vector<22x88xf32> -> vector<22x88xf32>
    %41 = arith.addf %36, %40 : vector<22x88xf32>
    %42 = vector.extract_strided_slice %35 {offsets = [2, 0], sizes = [22, 52], strides = [1, 1]} : vector<26x52xf32> to vector<22x52xf32>
    %c1_38 = arith.constant 1 : index
    %c0_39 = arith.constant 0 : index
    %c0_40 = arith.constant 0 : index
    %43 = vector.load %arg4[%c1_38, %c0_39, %c0_40] : memref<3x52x88xf32, #tpu.memory_space<vmem>>, vector<1x52x88xf32>
    %44 = vector.shape_cast %43 : vector<1x52x88xf32> to vector<52x88xf32>
    %cst_41 = arith.constant dense<0.000000e+00> : vector<22x88xf32>
    %45 = tpu.matmul %42, %44, %cst_41 {dimension_numbers = #tpu.dot_dimension_numbers<[1], [0], [0], [1], [0, 0, 1, 1], [], []>} : vector<22x52xf32>, vector<52x88xf32>, vector<22x88xf32> -> vector<22x88xf32>
    %46 = arith.addf %41, %45 : vector<22x88xf32>
    %47 = vector.extract_strided_slice %35 {offsets = [4, 0], sizes = [22, 52], strides = [1, 1]} : vector<26x52xf32> to vector<22x52xf32>
    %c2_42 = arith.constant 2 : index
    %c0_43 = arith.constant 0 : index
    %c0_44 = arith.constant 0 : index
    %48 = vector.load %arg4[%c2_42, %c0_43, %c0_44] : memref<3x52x88xf32, #tpu.memory_space<vmem>>, vector<1x52x88xf32>
    %49 = vector.shape_cast %48 : vector<1x52x88xf32> to vector<52x88xf32>
    %cst_45 = arith.constant dense<0.000000e+00> : vector<22x88xf32>
    %50 = tpu.matmul %47, %49, %cst_45 {dimension_numbers = #tpu.dot_dimension_numbers<[1], [0], [0], [1], [0, 0, 1, 1], [], []>} : vector<22x52xf32>, vector<52x88xf32>, vector<22x88xf32> -> vector<22x88xf32>
    %51 = arith.addf %46, %50 : vector<22x88xf32>
    %c0_46 = arith.constant 0 : index
    %c0_47 = arith.constant 0 : index
    %52 = vector.load %arg5[%c0_46, %c0_47] : memref<1x88xf32, #tpu.memory_space<vmem>>, vector<1x88xf32>
    %53 = vector.broadcast %52 : vector<1x88xf32> to vector<22x88xf32>
    %54 = arith.addf %51, %53 : vector<22x88xf32>
    %cst_48 = arith.constant 0.000000e+00 : f32
    %55 = vector.broadcast %cst_48 : f32 to vector<22x88xf32>
    %56 = arith.maximumf %54, %55 : vector<22x88xf32>
    %cst_49 = arith.constant 0.000000e+00 : f32
    %57 = vector.broadcast %cst_49 : f32 to vector<2x64xf32>
    %58 = vector.extract_strided_slice %56 {offsets = [0, 0], sizes = [2, 88], strides = [1, 1]} : vector<22x88xf32> to vector<2x88xf32>
    %c0_50 = arith.constant 0 : index
    %c0_51 = arith.constant 0 : index
    %c0_52 = arith.constant 0 : index
    %59 = vector.load %arg6[%c0_50, %c0_51, %c0_52] : memref<11x88x64xf32, #tpu.memory_space<vmem>>, vector<1x88x64xf32>
    %60 = vector.shape_cast %59 : vector<1x88x64xf32> to vector<88x64xf32>
    %cst_53 = arith.constant dense<0.000000e+00> : vector<2x64xf32>
    %61 = tpu.matmul %58, %60, %cst_53 {dimension_numbers = #tpu.dot_dimension_numbers<[1], [0], [0], [1], [0, 0, 1, 1], [], []>} : vector<2x88xf32>, vector<88x64xf32>, vector<2x64xf32> -> vector<2x64xf32>
    %62 = arith.addf %57, %61 : vector<2x64xf32>
    %63 = vector.extract_strided_slice %56 {offsets = [2, 0], sizes = [2, 88], strides = [1, 1]} : vector<22x88xf32> to vector<2x88xf32>
    %c1_54 = arith.constant 1 : index
    %c0_55 = arith.constant 0 : index
    %c0_56 = arith.constant 0 : index
    %64 = vector.load %arg6[%c1_54, %c0_55, %c0_56] : memref<11x88x64xf32, #tpu.memory_space<vmem>>, vector<1x88x64xf32>
    %65 = vector.shape_cast %64 : vector<1x88x64xf32> to vector<88x64xf32>
    %cst_57 = arith.constant dense<0.000000e+00> : vector<2x64xf32>
    %66 = tpu.matmul %63, %65, %cst_57 {dimension_numbers = #tpu.dot_dimension_numbers<[1], [0], [0], [1], [0, 0, 1, 1], [], []>} : vector<2x88xf32>, vector<88x64xf32>, vector<2x64xf32> -> vector<2x64xf32>
    %67 = arith.addf %62, %66 : vector<2x64xf32>
    %68 = vector.extract_strided_slice %56 {offsets = [4, 0], sizes = [2, 88], strides = [1, 1]} : vector<22x88xf32> to vector<2x88xf32>
    %c2_58 = arith.constant 2 : index
    %c0_59 = arith.constant 0 : index
    %c0_60 = arith.constant 0 : index
    %69 = vector.load %arg6[%c2_58, %c0_59, %c0_60] : memref<11x88x64xf32, #tpu.memory_space<vmem>>, vector<1x88x64xf32>
    %70 = vector.shape_cast %69 : vector<1x88x64xf32> to vector<88x64xf32>
    %cst_61 = arith.constant dense<0.000000e+00> : vector<2x64xf32>
    %71 = tpu.matmul %68, %70, %cst_61 {dimension_numbers = #tpu.dot_dimension_numbers<[1], [0], [0], [1], [0, 0, 1, 1], [], []>} : vector<2x88xf32>, vector<88x64xf32>, vector<2x64xf32> -> vector<2x64xf32>
    %72 = arith.addf %67, %71 : vector<2x64xf32>
    %73 = vector.extract_strided_slice %56 {offsets = [6, 0], sizes = [2, 88], strides = [1, 1]} : vector<22x88xf32> to vector<2x88xf32>
    %c3_62 = arith.constant 3 : index
    %c0_63 = arith.constant 0 : index
    %c0_64 = arith.constant 0 : index
    %74 = vector.load %arg6[%c3_62, %c0_63, %c0_64] : memref<11x88x64xf32, #tpu.memory_space<vmem>>, vector<1x88x64xf32>
    %75 = vector.shape_cast %74 : vector<1x88x64xf32> to vector<88x64xf32>
    %cst_65 = arith.constant dense<0.000000e+00> : vector<2x64xf32>
    %76 = tpu.matmul %73, %75, %cst_65 {dimension_numbers = #tpu.dot_dimension_numbers<[1], [0], [0], [1], [0, 0, 1, 1], [], []>} : vector<2x88xf32>, vector<88x64xf32>, vector<2x64xf32> -> vector<2x64xf32>
    %77 = arith.addf %72, %76 : vector<2x64xf32>
    %78 = vector.extract_strided_slice %56 {offsets = [8, 0], sizes = [2, 88], strides = [1, 1]} : vector<22x88xf32> to vector<2x88xf32>
    %c4_66 = arith.constant 4 : index
    %c0_67 = arith.constant 0 : index
    %c0_68 = arith.constant 0 : index
    %79 = vector.load %arg6[%c4_66, %c0_67, %c0_68] : memref<11x88x64xf32, #tpu.memory_space<vmem>>, vector<1x88x64xf32>
    %80 = vector.shape_cast %79 : vector<1x88x64xf32> to vector<88x64xf32>
    %cst_69 = arith.constant dense<0.000000e+00> : vector<2x64xf32>
    %81 = tpu.matmul %78, %80, %cst_69 {dimension_numbers = #tpu.dot_dimension_numbers<[1], [0], [0], [1], [0, 0, 1, 1], [], []>} : vector<2x88xf32>, vector<88x64xf32>, vector<2x64xf32> -> vector<2x64xf32>
    %82 = arith.addf %77, %81 : vector<2x64xf32>
    %83 = vector.extract_strided_slice %56 {offsets = [10, 0], sizes = [2, 88], strides = [1, 1]} : vector<22x88xf32> to vector<2x88xf32>
    %c5 = arith.constant 5 : index
    %c0_70 = arith.constant 0 : index
    %c0_71 = arith.constant 0 : index
    %84 = vector.load %arg6[%c5, %c0_70, %c0_71] : memref<11x88x64xf32, #tpu.memory_space<vmem>>, vector<1x88x64xf32>
    %85 = vector.shape_cast %84 : vector<1x88x64xf32> to vector<88x64xf32>
    %cst_72 = arith.constant dense<0.000000e+00> : vector<2x64xf32>
    %86 = tpu.matmul %83, %85, %cst_72 {dimension_numbers = #tpu.dot_dimension_numbers<[1], [0], [0], [1], [0, 0, 1, 1], [], []>} : vector<2x88xf32>, vector<88x64xf32>, vector<2x64xf32> -> vector<2x64xf32>
    %87 = arith.addf %82, %86 : vector<2x64xf32>
    %88 = vector.extract_strided_slice %56 {offsets = [12, 0], sizes = [2, 88], strides = [1, 1]} : vector<22x88xf32> to vector<2x88xf32>
    %c6 = arith.constant 6 : index
    %c0_73 = arith.constant 0 : index
    %c0_74 = arith.constant 0 : index
    %89 = vector.load %arg6[%c6, %c0_73, %c0_74] : memref<11x88x64xf32, #tpu.memory_space<vmem>>, vector<1x88x64xf32>
    %90 = vector.shape_cast %89 : vector<1x88x64xf32> to vector<88x64xf32>
    %cst_75 = arith.constant dense<0.000000e+00> : vector<2x64xf32>
    %91 = tpu.matmul %88, %90, %cst_75 {dimension_numbers = #tpu.dot_dimension_numbers<[1], [0], [0], [1], [0, 0, 1, 1], [], []>} : vector<2x88xf32>, vector<88x64xf32>, vector<2x64xf32> -> vector<2x64xf32>
    %92 = arith.addf %87, %91 : vector<2x64xf32>
    %93 = vector.extract_strided_slice %56 {offsets = [14, 0], sizes = [2, 88], strides = [1, 1]} : vector<22x88xf32> to vector<2x88xf32>
    %c7 = arith.constant 7 : index
    %c0_76 = arith.constant 0 : index
    %c0_77 = arith.constant 0 : index
    %94 = vector.load %arg6[%c7, %c0_76, %c0_77] : memref<11x88x64xf32, #tpu.memory_space<vmem>>, vector<1x88x64xf32>
    %95 = vector.shape_cast %94 : vector<1x88x64xf32> to vector<88x64xf32>
    %cst_78 = arith.constant dense<0.000000e+00> : vector<2x64xf32>
    %96 = tpu.matmul %93, %95, %cst_78 {dimension_numbers = #tpu.dot_dimension_numbers<[1], [0], [0], [1], [0, 0, 1, 1], [], []>} : vector<2x88xf32>, vector<88x64xf32>, vector<2x64xf32> -> vector<2x64xf32>
    %97 = arith.addf %92, %96 : vector<2x64xf32>
    %98 = vector.extract_strided_slice %56 {offsets = [16, 0], sizes = [2, 88], strides = [1, 1]} : vector<22x88xf32> to vector<2x88xf32>
    %c8 = arith.constant 8 : index
    %c0_79 = arith.constant 0 : index
    %c0_80 = arith.constant 0 : index
    %99 = vector.load %arg6[%c8, %c0_79, %c0_80] : memref<11x88x64xf32, #tpu.memory_space<vmem>>, vector<1x88x64xf32>
    %100 = vector.shape_cast %99 : vector<1x88x64xf32> to vector<88x64xf32>
    %cst_81 = arith.constant dense<0.000000e+00> : vector<2x64xf32>
    %101 = tpu.matmul %98, %100, %cst_81 {dimension_numbers = #tpu.dot_dimension_numbers<[1], [0], [0], [1], [0, 0, 1, 1], [], []>} : vector<2x88xf32>, vector<88x64xf32>, vector<2x64xf32> -> vector<2x64xf32>
    %102 = arith.addf %97, %101 : vector<2x64xf32>
    %103 = vector.extract_strided_slice %56 {offsets = [18, 0], sizes = [2, 88], strides = [1, 1]} : vector<22x88xf32> to vector<2x88xf32>
    %c9 = arith.constant 9 : index
    %c0_82 = arith.constant 0 : index
    %c0_83 = arith.constant 0 : index
    %104 = vector.load %arg6[%c9, %c0_82, %c0_83] : memref<11x88x64xf32, #tpu.memory_space<vmem>>, vector<1x88x64xf32>
    %105 = vector.shape_cast %104 : vector<1x88x64xf32> to vector<88x64xf32>
    %cst_84 = arith.constant dense<0.000000e+00> : vector<2x64xf32>
    %106 = tpu.matmul %103, %105, %cst_84 {dimension_numbers = #tpu.dot_dimension_numbers<[1], [0], [0], [1], [0, 0, 1, 1], [], []>} : vector<2x88xf32>, vector<88x64xf32>, vector<2x64xf32> -> vector<2x64xf32>
    %107 = arith.addf %102, %106 : vector<2x64xf32>
    %108 = vector.extract_strided_slice %56 {offsets = [20, 0], sizes = [2, 88], strides = [1, 1]} : vector<22x88xf32> to vector<2x88xf32>
    %c10 = arith.constant 10 : index
    %c0_85 = arith.constant 0 : index
    %c0_86 = arith.constant 0 : index
    %109 = vector.load %arg6[%c10, %c0_85, %c0_86] : memref<11x88x64xf32, #tpu.memory_space<vmem>>, vector<1x88x64xf32>
    %110 = vector.shape_cast %109 : vector<1x88x64xf32> to vector<88x64xf32>
    %cst_87 = arith.constant dense<0.000000e+00> : vector<2x64xf32>
    %111 = tpu.matmul %108, %110, %cst_87 {dimension_numbers = #tpu.dot_dimension_numbers<[1], [0], [0], [1], [0, 0, 1, 1], [], []>} : vector<2x88xf32>, vector<88x64xf32>, vector<2x64xf32> -> vector<2x64xf32>
    %112 = arith.addf %107, %111 : vector<2x64xf32>
    %c0_88 = arith.constant 0 : index
    %c0_89 = arith.constant 0 : index
    %113 = vector.load %arg7[%c0_88, %c0_89] : memref<1x64xf32, #tpu.memory_space<vmem>>, vector<1x64xf32>
    %114 = vector.broadcast %113 : vector<1x64xf32> to vector<2x64xf32>
    %115 = arith.addf %112, %114 : vector<2x64xf32>
    %cst_90 = arith.constant 0.000000e+00 : f32
    %116 = vector.broadcast %cst_90 : f32 to vector<2x64xf32>
    %117 = arith.maximumf %115, %116 : vector<2x64xf32>
    %c0_91 = arith.constant 0 : index
    %c0_92 = arith.constant 0 : index
    %118 = vector.load %arg1[%c0_91, %c0_92] : memref<2x8xf32, #tpu.memory_space<vmem>>, vector<2x8xf32>
    %c0_93 = arith.constant 0 : index
    %c0_94 = arith.constant 0 : index
    %119 = vector.load %arg8[%c0_93, %c0_94] : memref<8x64xf32, #tpu.memory_space<vmem>>, vector<8x64xf32>
    %cst_95 = arith.constant dense<0.000000e+00> : vector<2x64xf32>
    %120 = tpu.matmul %118, %119, %cst_95 {dimension_numbers = #tpu.dot_dimension_numbers<[1], [0], [0], [1], [0, 0, 1, 1], [], []>} : vector<2x8xf32>, vector<8x64xf32>, vector<2x64xf32> -> vector<2x64xf32>
    %c0_96 = arith.constant 0 : index
    %c0_97 = arith.constant 0 : index
    %121 = vector.load %arg9[%c0_96, %c0_97] : memref<1x64xf32, #tpu.memory_space<vmem>>, vector<1x64xf32>
    %122 = vector.broadcast %121 : vector<1x64xf32> to vector<2x64xf32>
    %123 = arith.addf %120, %122 : vector<2x64xf32>
    %cst_98 = arith.constant 0.000000e+00 : f32
    %124 = vector.broadcast %cst_98 : f32 to vector<2x64xf32>
    %125 = arith.maximumf %123, %124 : vector<2x64xf32>
    %c0_99 = arith.constant 0 : index
    %c0_100 = arith.constant 0 : index
    %126 = vector.load %arg10[%c0_99, %c0_100] : memref<64x64xf32, #tpu.memory_space<vmem>>, vector<64x64xf32>
    %cst_101 = arith.constant dense<0.000000e+00> : vector<2x64xf32>
    %127 = tpu.matmul %125, %126, %cst_101 {dimension_numbers = #tpu.dot_dimension_numbers<[1], [0], [0], [1], [0, 0, 1, 1], [], []>} : vector<2x64xf32>, vector<64x64xf32>, vector<2x64xf32> -> vector<2x64xf32>
    %c0_102 = arith.constant 0 : index
    %c0_103 = arith.constant 0 : index
    %128 = vector.load %arg11[%c0_102, %c0_103] : memref<64x64xf32, #tpu.memory_space<vmem>>, vector<64x64xf32>
    %cst_104 = arith.constant dense<0.000000e+00> : vector<2x64xf32>
    %129 = tpu.matmul %117, %128, %cst_104 {dimension_numbers = #tpu.dot_dimension_numbers<[1], [0], [0], [1], [0, 0, 1, 1], [], []>} : vector<2x64xf32>, vector<64x64xf32>, vector<2x64xf32> -> vector<2x64xf32>
    %130 = arith.addf %127, %129 : vector<2x64xf32>
    %c0_105 = arith.constant 0 : index
    %c0_106 = arith.constant 0 : index
    %131 = vector.load %arg12[%c0_105, %c0_106] : memref<1x64xf32, #tpu.memory_space<vmem>>, vector<1x64xf32>
    %132 = vector.broadcast %131 : vector<1x64xf32> to vector<2x64xf32>
    %133 = arith.addf %130, %132 : vector<2x64xf32>
    %cst_107 = arith.constant 0.000000e+00 : f32
    %134 = vector.broadcast %cst_107 : f32 to vector<2x64xf32>
    %135 = arith.maximumf %133, %134 : vector<2x64xf32>
    %c0_108 = arith.constant 0 : index
    %c0_109 = arith.constant 0 : index
    %136 = vector.load %arg13[%c0_108, %c0_109] : memref<64x32xf32, #tpu.memory_space<vmem>>, vector<64x32xf32>
    %cst_110 = arith.constant dense<0.000000e+00> : vector<2x32xf32>
    %137 = tpu.matmul %135, %136, %cst_110 {dimension_numbers = #tpu.dot_dimension_numbers<[1], [0], [0], [1], [0, 0, 1, 1], [], []>} : vector<2x64xf32>, vector<64x32xf32>, vector<2x32xf32> -> vector<2x32xf32>
    %c0_111 = arith.constant 0 : index
    %c0_112 = arith.constant 0 : index
    %138 = vector.load %arg14[%c0_111, %c0_112] : memref<1x32xf32, #tpu.memory_space<vmem>>, vector<1x32xf32>
    %139 = vector.broadcast %138 : vector<1x32xf32> to vector<2x32xf32>
    %140 = arith.addf %137, %139 : vector<2x32xf32>
    %cst_113 = arith.constant 0.000000e+00 : f32
    %141 = vector.broadcast %cst_113 : f32 to vector<2x32xf32>
    %142 = arith.maximumf %140, %141 : vector<2x32xf32>
    %c0_114 = arith.constant 0 : index
    %c0_115 = arith.constant 0 : index
    %143 = vector.load %arg15[%c0_114, %c0_115] : memref<32x2xf32, #tpu.memory_space<vmem>>, vector<32x2xf32>
    %cst_116 = arith.constant dense<0.000000e+00> : vector<2x2xf32>
    %144 = tpu.matmul %142, %143, %cst_116 {dimension_numbers = #tpu.dot_dimension_numbers<[1], [0], [0], [1], [0, 0, 1, 1], [], []>} : vector<2x32xf32>, vector<32x2xf32>, vector<2x2xf32> -> vector<2x2xf32>
    %c0_117 = arith.constant 0 : index
    %c0_118 = arith.constant 0 : index
    %145 = vector.load %arg16[%c0_117, %c0_118] : memref<1x2xf32, #tpu.memory_space<vmem>>, vector<1x2xf32>
    %146 = vector.broadcast %145 : vector<1x2xf32> to vector<2x2xf32>
    %147 = arith.addf %144, %146 : vector<2x2xf32>
    %148 = math.tanh %147 : vector<2x2xf32>
    %c0_119 = arith.constant 0 : index
    %c0_120 = arith.constant 0 : index
    %149 = vector.load %arg17[%c0_119, %c0_120] : memref<2x2xf32, #tpu.memory_space<vmem>>, vector<2x2xf32>
    tpu.vector_store %arg17[%c0_119, %c0_120], %148 {strides = array<i32>} : memref<2x2xf32, #tpu.memory_space<vmem>>, vector<2x2xf32>,
    return
  }
}

</mosaic_0001>

<llo_original>
// kernel: actor_forward.1
$region0: #{actor_forward.1}
  #allocation0 [shape = 'u32[]', space=smem, size = 0x4, offset = 0x4, fixed_abs, tag = 'smem constant byte address 0x4 - core index']
  #allocation1 [shape = 'u32[144,128]{1,0:T(1,128)}', space=vmem, size = 0x12000, scoped, tag = 'internal scratch']
  %s0 = inlined_call_operand.vmem [shape: f32[2,30,120], index: 0, kind: input, shape index: {}]
  %s1 = inlined_call_operand.vmem [shape: f32[2,8], index: 1, kind: input, shape index: {}]
  %s2 = inlined_call_operand.vmem [shape: f32[5,120,52], index: 2, kind: input, shape index: {}]
  %s3 = inlined_call_operand.vmem [shape: f32[1,52], index: 3, kind: input, shape index: {}]
  %s4 = inlined_call_operand.vmem [shape: f32[3,52,88], index: 4, kind: input, shape index: {}]
  %s5 = inlined_call_operand.vmem [shape: f32[1,88], index: 5, kind: input, shape index: {}]
  %s6 = inlined_call_operand.vmem [shape: f32[11,88,64], index: 6, kind: input, shape index: {}]
  %s7 = inlined_call_operand.vmem [shape: f32[1,64], index: 7, kind: input, shape index: {}]
  %s8 = inlined_call_operand.vmem [shape: f32[8,64], index: 8, kind: input, shape index: {}]
  %s9 = inlined_call_operand.vmem [shape: f32[1,64], index: 9, kind: input, shape index: {}]
  %s10 = inlined_call_operand.vmem [shape: f32[64,64], index: 10, kind: input, shape index: {}]
  %s11 = inlined_call_operand.vmem [shape: f32[64,64], index: 11, kind: input, shape index: {}]
  %s12 = inlined_call_operand.vmem [shape: f32[1,64], index: 12, kind: input, shape index: {}]
  %s13 = inlined_call_operand.vmem [shape: f32[64,32], index: 13, kind: input, shape index: {}]
  %s14 = inlined_call_operand.vmem [shape: f32[1,32], index: 14, kind: input, shape index: {}]
  %s15 = inlined_call_operand.vmem [shape: f32[32,2], index: 15, kind: input, shape index: {}]
  %s16 = inlined_call_operand.vmem [shape: f32[1,2], index: 16, kind: input, shape index: {}]
  %s17 = inlined_call_operand.hbm [shape: f32[2,2], index: 17, kind: output, shape index: {}]
  %s18 = sld [smem:[#allocation0]]
  $region78: #{actor_forward.1} parent=0
    _
  %s20 = ssub.s32 1, %s18
  %s21 = scalar_select 0, %s20, %s18
  $region1: #{actor_forward.1} parent=0
    #allocation2 [shape = 'u8[1024]{0}', space=vmem, size = 0x400, scoped, tag = 'output window, operand 0, single buffered']
    #allocation3 [shape = 's32[1]{0}', space=sflag, size = 0x4, scoped, tag = 'scoped memory for actor_forward.1']
    %22 = vsyncpa [#allocation3], 0
    // Predicated region
    $region2: #{actor_forward.1} parent=1 // pred_check
      _
    $region3: #{actor_forward.1} parent=1 // pred_check_branch
      %24 = sbr.rel (0) target = $region5
    $region4: #{actor_forward.1} parent=1 // pred_region
      _
    $region5: #{actor_forward.1} parent=1 // pred_fallthru
      _
    // Predicated region
    $region6: #{actor_forward.1} parent=1 // pred_check
      _
    $region7: #{actor_forward.1} parent=1 // pred_check_branch
      %26 = sbr.rel (0) target = $region9
    $region8: #{actor_forward.1} parent=1 // pred_region
      _
    $region9: #{actor_forward.1} parent=1 // pred_fallthru
      _
    // Predicated region
    $region10: #{actor_forward.1} parent=1 // pred_check
      _
    $region11: #{actor_forward.1} parent=1 // pred_check_branch
      %28 = sbr.rel (0) target = $region13
    $region12: #{actor_forward.1} parent=1 // pred_region
      _
    $region13: #{actor_forward.1} parent=1 // pred_fallthru
      _
    // Predicated region
    $region14: #{actor_forward.1} parent=1 // pred_check
      _
    $region15: #{actor_forward.1} parent=1 // pred_check_branch
      %30 = sbr.rel (0) target = $region17
    $region16: #{actor_forward.1} parent=1 // pred_region
      _
    $region17: #{actor_forward.1} parent=1 // pred_fallthru
      _
    // Predicated region
    $region18: #{actor_forward.1} parent=1 // pred_check
      _
    $region19: #{actor_forward.1} parent=1 // pred_check_branch
      %32 = sbr.rel (0) target = $region21
    $region20: #{actor_forward.1} parent=1 // pred_region
      _
    $region21: #{actor_forward.1} parent=1 // pred_fallthru
      _
    // Predicated region
    $region22: #{actor_forward.1} parent=1 // pred_check
      _
    $region23: #{actor_forward.1} parent=1 // pred_check_branch
      %34 = sbr.rel (0) target = $region25
    $region24: #{actor_forward.1} parent=1 // pred_region
      _
    $region25: #{actor_forward.1} parent=1 // pred_fallthru
      _
    // Predicated region
    $region26: #{actor_forward.1} parent=1 // pred_check
      _
    $region27: #{actor_forward.1} parent=1 // pred_check_branch
      %36 = sbr.rel (0) target = $region29
    $region28: #{actor_forward.1} parent=1 // pred_region
      _
    $region29: #{actor_forward.1} parent=1 // pred_fallthru
      _
    // Predicated region
    $region30: #{actor_forward.1} parent=1 // pred_check
      _
    $region31: #{actor_forward.1} parent=1 // pred_check_branch
      %38 = sbr.rel (0) target = $region33
    $region32: #{actor_forward.1} parent=1 // pred_region
      _
    $region33: #{actor_forward.1} parent=1 // pred_fallthru
      _
    // Predicated region
    $region34: #{actor_forward.1} parent=1 // pred_check
      _
    $region35: #{actor_forward.1} parent=1 // pred_check_branch
      %40 = sbr.rel (0) target = $region37
    $region36: #{actor_forward.1} parent=1 // pred_region
      _
    $region37: #{actor_forward.1} parent=1 // pred_fallthru
      _
    // Predicated region
    $region38: #{actor_forward.1} parent=1 // pred_check
      _
    $region39: #{actor_forward.1} parent=1 // pred_check_branch
      %42 = sbr.rel (0) target = $region41
    $region40: #{actor_forward.1} parent=1 // pred_region
      _
    $region41: #{actor_forward.1} parent=1 // pred_fallthru
      _
    // Predicated region
    $region42: #{actor_forward.1} parent=1 // pred_check
      _
    $region43: #{actor_forward.1} parent=1 // pred_check_branch
      %44 = sbr.rel (0) target = $region45
    $region44: #{actor_forward.1} parent=1 // pred_region
      _
    $region45: #{actor_forward.1} parent=1 // pred_fallthru
      _
    // Predicated region
    $region46: #{actor_forward.1} parent=1 // pred_check
      _
    $region47: #{actor_forward.1} parent=1 // pred_check_branch
      %46 = sbr.rel (0) target = $region49
    $region48: #{actor_forward.1} parent=1 // pred_region
      _
    $region49: #{actor_forward.1} parent=1 // pred_fallthru
      _
    // Predicated region
    $region50: #{actor_forward.1} parent=1 // pred_check
      _
    $region51: #{actor_forward.1} parent=1 // pred_check_branch
      %48 = sbr.rel (0) target = $region53
    $region52: #{actor_forward.1} parent=1 // pred_region
      _
    $region53: #{actor_forward.1} parent=1 // pred_fallthru
      _
    // Predicated region
    $region54: #{actor_forward.1} parent=1 // pred_check
      _
    $region55: #{actor_forward.1} parent=1 // pred_check_branch
      %50 = sbr.rel (0) target = $region57
    $region56: #{actor_forward.1} parent=1 // pred_region
      _
    $region57: #{actor_forward.1} parent=1 // pred_fallthru
      _
    // Predicated region
    $region58: #{actor_forward.1} parent=1 // pred_check
      _
    $region59: #{actor_forward.1} parent=1 // pred_check_branch
      %52 = sbr.rel (0) target = $region61
    $region60: #{actor_forward.1} parent=1 // pred_region
      _
    $region61: #{actor_forward.1} parent=1 // pred_fallthru
      _
    // Predicated region
    $region62: #{actor_forward.1} parent=1 // pred_check
      _
    $region63: #{actor_forward.1} parent=1 // pred_check_branch
      %54 = sbr.rel (0) target = $region65
    $region64: #{actor_forward.1} parent=1 // pred_region
      _
    $region65: #{actor_forward.1} parent=1 // pred_fallthru
      _
    // Predicated region
    $region66: #{actor_forward.1} parent=1 // pred_check
      _
    $region67: #{actor_forward.1} parent=1 // pred_check_branch
      %56 = sbr.rel (0) target = $region69
    $region68: #{actor_forward.1} parent=1 // pred_region
      _
    $region69: #{actor_forward.1} parent=1 // pred_fallthru
      _
    %v57 = vld [vmem:[%s0] sm:$0xff]
    %v58 = vld [vmem:[%s0 + $0x8] sm:$0xff]
    %v59 = vld [vmem:[%s0 + $0x10] sm:$0xff]
    %v60 = vld [vmem:[%s0 + $0x18] sm:$0x3]
    %v61 = vld [vmem:[%s2] sm:$0xff]
    %v62 = vld [vmem:[%s2 + $0x8] sm:$0xff]
    %v63 = vld [vmem:[%s2 + $0x10] sm:$0xff]
    %v64 = vld [vmem:[%s2 + $0x18] sm:$0xff]
    %v65 = vld [vmem:[%s2 + $0x20] sm:$0xff]
    %v66 = vld [vmem:[%s2 + $0x28] sm:$0xff]
    %v67 = vld [vmem:[%s2 + $0x30] sm:$0xff]
    %v68 = vld [vmem:[%s2 + $0x38] sm:$0xff]
    %v69 = vld [vmem:[%s2 + $0x40] sm:$0xff]
    %v70 = vld [vmem:[%s2 + $0x48] sm:$0xff]
    %v71 = vld [vmem:[%s2 + $0x50] sm:$0xff]
    %v72 = vld [vmem:[%s2 + $0x58] sm:$0xff]
    %v73 = vld [vmem:[%s2 + $0x60] sm:$0xff]
    %v74 = vld [vmem:[%s2 + $0x68] sm:$0xff]
    %v75 = vld [vmem:[%s2 + $0x70] sm:$0xff]
    %s76 = scalar_lea.vmem %s0, 32
    %v77 = vld [vmem:[%s76] sm:$0xff]
    %v78 = vld [vmem:[%s76 + $0x8] sm:$0xff]
    %v79 = vld [vmem:[%s76 + $0x10] sm:$0xff]
    %v80 = vld [vmem:[%s76 + $0x18] sm:$0x3]
    %s81 = scalar_lea.vmem %s2, 120
    %v82 = vld [vmem:[%s81] sm:$0xff]
    %v83 = vld [vmem:[%s81 + $0x8] sm:$0xff]
    %v84 = vld [vmem:[%s81 + $0x10] sm:$0xff]
    %v85 = vld [vmem:[%s81 + $0x18] sm:$0xff]
    %v86 = vld [vmem:[%s81 + $0x20] sm:$0xff]
    %v87 = vld [vmem:[%s81 + $0x28] sm:$0xff]
    %v88 = vld [vmem:[%s81 + $0x30] sm:$0xff]
    %v89 = vld [vmem:[%s81 + $0x38] sm:$0xff]
    %v90 = vld [vmem:[%s81 + $0x40] sm:$0xff]
    %v91 = vld [vmem:[%s81 + $0x48] sm:$0xff]
    %v92 = vld [vmem:[%s81 + $0x50] sm:$0xff]
    %v93 = vld [vmem:[%s81 + $0x58] sm:$0xff]
    %v94 = vld [vmem:[%s81 + $0x60] sm:$0xff]
    %v95 = vld [vmem:[%s81 + $0x68] sm:$0xff]
    %v96 = vld [vmem:[%s81 + $0x70] sm:$0xff]
    %vm97 = vcmask 982016
    %v99 = vsel %vm97, %v77, 0
    %v102 = vsel %vm97, %v78, 0
    %v105 = vsel %vm97, %v79, 0
    %v108 = vsel %vm97, %v80, 0
    %110 = vmatprep.subr.mxu0 0.0
    %111 = vmatpush1.msra.mxu0 0.0
    %112 = vmatprep.subr.mxu0 0.0
    %113 = vmatpush1.msra.mxu0 %v96
    %114 = vmatprep.subr.mxu0 0.0
    %115 = vmatpush1.msra.mxu0 %v95
    %116 = vmatprep.subr.mxu0 0.0
    %117 = vmatpush1.msra.mxu0 %v94
    %118 = vmatprep.subr.mxu0 0.0
    %119 = vmatpush1.msra.mxu0 %v93
    %120 = vmatprep.subr.mxu0 0.0
    %121 = vmatpush1.msra.mxu0 %v92
    %122 = vmatprep.subr.mxu0 0.0
    %123 = vmatpush1.msra.mxu0 %v91
    %124 = vmatprep.subr.mxu0 0.0
    %125 = vmatpush1.msra.mxu0 %v90
    %126 = vmatprep.subr.mxu0 0.0
    %127 = vmatpush1.msra.mxu0 %v89
    %128 = vmatprep.subr.mxu0 0.0
    %129 = vmatpush1.msra.mxu0 %v88
    %130 = vmatprep.subr.mxu0 0.0
    %131 = vmatpush1.msra.mxu0 %v87
    %132 = vmatprep.subr.mxu0 0.0
    %133 = vmatpush1.msra.mxu0 %v86
    %134 = vmatprep.subr.mxu0 0.0
    %135 = vmatpush1.msra.mxu0 %v85
    %136 = vmatprep.subr.mxu0 0.0
    %137 = vmatpush1.msra.mxu0 %v84
    %138 = vmatprep.subr.mxu0 0.0
    %139 = vmatpush1.msra.mxu0 %v83
    %140 = vmatprep.subr.mxu0 0.0
    %141 = vmatpush1.msra.mxu0 %v82
    %142 = vmatprep.subr.mxu0 0.0
    %143 = vmatpush2.msra.mxu0 0.0
    %144 = vmatprep.subr.mxu0 0.0
    %145 = vmatpush2.msra.mxu0 0.0
    %146 = vmatprep.subr.mxu0 0.0
    %147 = vmatpush2.msra.mxu0 0.0
    %148 = vmatprep.subr.mxu0 0.0
    %149 = vmatpush2.msra.mxu0 0.0
    %150 = vmatprep.subr.mxu0 0.0
    %151 = vmatpush2.msra.mxu0 0.0
    %152 = vmatprep.subr.mxu0 0.0
    %153 = vmatpush2.msra.mxu0 0.0
    %154 = vmatprep.subr.mxu0 0.0
    %155 = vmatpush2.msra.mxu0 0.0
    %156 = vmatprep.subr.mxu0 0.0
    %157 = vmatpush2.msra.mxu0 0.0
    %158 = vmatprep.subr.mxu0 0.0
    %159 = vmatpush2.msra.mxu0 0.0
    %160 = vmatprep.subr.mxu0 0.0
    %161 = vmatpush2.msra.mxu0 0.0
    %162 = vmatprep.subr.mxu0 0.0
    %163 = vmatpush2.msra.mxu0 0.0
    %164 = vmatprep.subr.mxu0 0.0
    %165 = vmatpush2.msra.mxu0 0.0
    %166 = vmatprep.subr.mxu0 0.0
    %167 = vmatpush2.msra.mxu0 0.0
    %168 = vmatprep.subr.mxu0 0.0
    %169 = vmatpush2.msra.mxu0 0.0
    %170 = vmatprep.subr.mxu0 0.0
    %171 = vmatpush2.msra.mxu0 0.0
    %172 = vmatprep.subr.mxu0 0.0
    %173 = vmatpush2.msra.mxu0 0.0
    %174 = vmatprep.mubr.f32.mxu0 0.0
    %175 = vmatmul.mubr.f32.gmra.mxu0 %v99
    %v176 = vpop.f32.mrf.mxu0
    %v177 = vadd.f32 0.0, %v176
    %v178 = vpop.f32.mrf.mxu0
    %179 = vmatprep.mubr.f32.mxu0 0.0
    %180 = vmatmul.mubr.f32.gmra.mxu0 %v102
    %v181 = vpop.f32.mrf.mxu0
    %v182 = vadd.f32 0.0, %v181
    %v183 = vpop.f32.mrf.mxu0
    %184 = vmatprep.mubr.f32.mxu0 0.0
    %185 = vmatmul.mubr.f32.gmra.mxu0 %v105
    %v186 = vpop.f32.mrf.mxu0
    %v187 = vadd.f32 0.0, %v186
    %v188 = vpop.f32.mrf.mxu0
    %189 = vmatprep.mubr.f32.mxu0 0.0
    %190 = vmatmul.mubr.f32.gmra.mxu0 %v108
    %v191 = vpop.f32.mrf.mxu0
    %v192 = vadd.f32 0.0, %v191
    %v193 = vpop.f32.mrf.mxu0
    %194 = vdwg.mxu0
    %v196 = vsel %vm97, %v57, 0
    %v199 = vsel %vm97, %v58, 0
    %v202 = vsel %vm97, %v59, 0
    %v205 = vsel %vm97, %v60, 0
    %207 = vmatprep.subr.mxu0 0.0
    %208 = vmatpush1.msra.mxu0 0.0
    %209 = vmatprep.subr.mxu0 0.0
    %210 = vmatpush1.msra.mxu0 %v75
    %211 = vmatprep.subr.mxu0 0.0
    %212 = vmatpush1.msra.mxu0 %v74
    %213 = vmatprep.subr.mxu0 0.0
    %214 = vmatpush1.msra.mxu0 %v73
    %215 = vmatprep.subr.mxu0 0.0
    %216 = vmatpush1.msra.mxu0 %v72
    %217 = vmatprep.subr.mxu0 0.0
    %218 = vmatpush1.msra.mxu0 %v71
    %219 = vmatprep.subr.mxu0 0.0
    %220 = vmatpush1.msra.mxu0 %v70
    %221 = vmatprep.subr.mxu0 0.0
    %222 = vmatpush1.msra.mxu0 %v69
    %223 = vmatprep.subr.mxu0 0.0
    %224 = vmatpush1.msra.mxu0 %v68
    %225 = vmatprep.subr.mxu0 0.0
    %226 = vmatpush1.msra.mxu0 %v67
    %227 = vmatprep.subr.mxu0 0.0
    %228 = vmatpush1.msra.mxu0 %v66
    %229 = vmatprep.subr.mxu0 0.0
    %230 = vmatpush1.msra.mxu0 %v65
    %231 = vmatprep.subr.mxu0 0.0
    %232 = vmatpush1.msra.mxu0 %v64
    %233 = vmatprep.subr.mxu0 0.0
    %234 = vmatpush1.msra.mxu0 %v63
    %235 = vmatprep.subr.mxu0 0.0
    %236 = vmatpush1.msra.mxu0 %v62
    %237 = vmatprep.subr.mxu0 0.0
    %238 = vmatpush1.msra.mxu0 %v61
    %239 = vmatprep.subr.mxu0 0.0
    %240 = vmatpush2.msra.mxu0 0.0
    %241 = vmatprep.subr.mxu0 0.0
    %242 = vmatpush2.msra.mxu0 0.0
    %243 = vmatprep.subr.mxu0 0.0
    %244 = vmatpush2.msra.mxu0 0.0
    %245 = vmatprep.subr.mxu0 0.0
    %246 = vmatpush2.msra.mxu0 0.0
    %247 = vmatprep.subr.mxu0 0.0
    %248 = vmatpush2.msra.mxu0 0.0
    %249 = vmatprep.subr.mxu0 0.0
    %250 = vmatpush2.msra.mxu0 0.0
    %251 = vmatprep.subr.mxu0 0.0
    %252 = vmatpush2.msra.mxu0 0.0
    %253 = vmatprep.subr.mxu0 0.0
    %254 = vmatpush2.msra.mxu0 0.0
    %255 = vmatprep.subr.mxu0 0.0
    %256 = vmatpush2.msra.mxu0 0.0
    %257 = vmatprep.subr.mxu0 0.0
    %258 = vmatpush2.msra.mxu0 0.0
    %259 = vmatprep.subr.mxu0 0.0
    %260 = vmatpush2.msra.mxu0 0.0
    %261 = vmatprep.subr.mxu0 0.0
    %262 = vmatpush2.msra.mxu0 0.0
    %263 = vmatprep.subr.mxu0 0.0
    %264 = vmatpush2.msra.mxu0 0.0
    %265 = vmatprep.subr.mxu0 0.0
    %266 = vmatpush2.msra.mxu0 0.0
    %267 = vmatprep.subr.mxu0 0.0
    %268 = vmatpush2.msra.mxu0 0.0
    %269 = vmatprep.subr.mxu0 0.0
    %270 = vmatpush2.msra.mxu0 0.0
    %271 = vmatprep.mubr.f32.mxu0 0.0
    %272 = vmatmul.mubr.f32.gmra.mxu0 %v196
    %v273 = vpop.f32.mrf.mxu0
    %v274 = vadd.f32 %v177, %v273
    %v275 = vpop.f32.mrf.mxu0
    %276 = vmatprep.mubr.f32.mxu0 0.0
    %277 = vmatmul.mubr.f32.gmra.mxu0 %v199
    %v278 = vpop.f32.mrf.mxu0
    %v279 = vadd.f32 %v182, %v278
    %v280 = vpop.f32.mrf.mxu0
    %281 = vmatprep.mubr.f32.mxu0 0.0
    %282 = vmatmul.mubr.f32.gmra.mxu0 %v202
    %v283 = vpop.f32.mrf.mxu0
    %v284 = vadd.f32 %v187, %v283
    %v285 = vpop.f32.mrf.mxu0
    %286 = vmatprep.mubr.f32.mxu0 0.0
    %287 = vmatmul.mubr.f32.gmra.mxu0 %v205
    %v288 = vpop.f32.mrf.mxu0
    %v289 = vadd.f32 %v192, %v288
    %v290 = vpop.f32.mrf.mxu0
    %291 = vdwg.mxu0
    %v292 = vld [vmem:[%s0 + $0x2] sm:$0xff]
    %v293 = vld [vmem:[%s0 + $0xa] sm:$0xff]
    %v294 = vld [vmem:[%s0 + $0x12] sm:$0xff]
    %v295 = vld [vmem:[%s0 + $0x1a] sm:$0x3]
    %s296 = scalar_lea.vmem %s2, 240
    %v297 = vld [vmem:[%s296] sm:$0xff]
    %v298 = vld [vmem:[%s296 + $0x8] sm:$0xff]
    %v299 = vld [vmem:[%s296 + $0x10] sm:$0xff]
    %v300 = vld [vmem:[%s296 + $0x18] sm:$0xff]
    %v301 = vld [vmem:[%s296 + $0x20] sm:$0xff]
    %v302 = vld [vmem:[%s296 + $0x28] sm:$0xff]
    %v303 = vld [vmem:[%s296 + $0x30] sm:$0xff]
    %v304 = vld [vmem:[%s296 + $0x38] sm:$0xff]
    %v305 = vld [vmem:[%s296 + $0x40] sm:$0xff]
    %v306 = vld [vmem:[%s296 + $0x48] sm:$0xff]
    %v307 = vld [vmem:[%s296 + $0x50] sm:$0xff]
    %v308 = vld [vmem:[%s296 + $0x58] sm:$0xff]
    %v309 = vld [vmem:[%s296 + $0x60] sm:$0xff]
    %v310 = vld [vmem:[%s296 + $0x68] sm:$0xff]
    %v311 = vld [vmem:[%s296 + $0x70] sm:$0xff]
    %v313 = vsel %vm97, %v292, 0
    %v316 = vsel %vm97, %v293, 0
    %v319 = vsel %vm97, %v294, 0
    %v322 = vsel %vm97, %v295, 0
    %324 = vmatprep.subr.mxu0 0.0
    %325 = vmatpush1.msra.mxu0 0.0
    %326 = vmatprep.subr.mxu0 0.0
    %327 = vmatpush1.msra.mxu0 %v311
    %328 = vmatprep.subr.mxu0 0.0
    %329 = vmatpush1.msra.mxu0 %v310
    %330 = vmatprep.subr.mxu0 0.0
    %331 = vmatpush1.msra.mxu0 %v309
    %332 = vmatprep.subr.mxu0 0.0
    %333 = vmatpush1.msra.mxu0 %v308
    %334 = vmatprep.subr.mxu0 0.0
    %335 = vmatpush1.msra.mxu0 %v307
    %336 = vmatprep.subr.mxu0 0.0
    %337 = vmatpush1.msra.mxu0 %v306
    %338 = vmatprep.subr.mxu0 0.0
    %339 = vmatpush1.msra.mxu0 %v305
    %340 = vmatprep.subr.mxu0 0.0
    %341 = vmatpush1.msra.mxu0 %v304
    %342 = vmatprep.subr.mxu0 0.0
    %343 = vmatpush1.msra.mxu0 %v303
    %344 = vmatprep.subr.mxu0 0.0
    %345 = vmatpush1.msra.mxu0 %v302
    %346 = vmatprep.subr.mxu0 0.0
    %347 = vmatpush1.msra.mxu0 %v301
    %348 = vmatprep.subr.mxu0 0.0
    %349 = vmatpush1.msra.mxu0 %v300
    %350 = vmatprep.subr.mxu0 0.0
    %351 = vmatpush1.msra.mxu0 %v299
    %352 = vmatprep.subr.mxu0 0.0
    %353 = vmatpush1.msra.mxu0 %v298
    %354 = vmatprep.subr.mxu0 0.0
    %355 = vmatpush1.msra.mxu0 %v297
    %356 = vmatprep.subr.mxu0 0.0
    %357 = vmatpush2.msra.mxu0 0.0
    %358 = vmatprep.subr.mxu0 0.0
    %359 = vmatpush2.msra.mxu0 0.0
    %360 = vmatprep.subr.mxu0 0.0
    %361 = vmatpush2.msra.mxu0 0.0
    %362 = vmatprep.subr.mxu0 0.0
    %363 = vmatpush2.msra.mxu0 0.0
    %364 = vmatprep.subr.mxu0 0.0
    %365 = vmatpush2.msra.mxu0 0.0
    %366 = vmatprep.subr.mxu0 0.0
    %367 = vmatpush2.msra.mxu0 0.0
    %368 = vmatprep.subr.mxu0 0.0
    %369 = vmatpush2.msra.mxu0 0.0
    %370 = vmatprep.subr.mxu0 0.0
    %371 = vmatpush2.msra.mxu0 0.0
    %372 = vmatprep.subr.mxu0 0.0
    %373 = vmatpush2.msra.mxu0 0.0
    %374 = vmatprep.subr.mxu0 0.0
    %375 = vmatpush2.msra.mxu0 0.0
    %376 = vmatprep.subr.mxu0 0.0
    %377 = vmatpush2.msra.mxu0 0.0
    %378 = vmatprep.subr.mxu0 0.0
    %379 = vmatpush2.msra.mxu0 0.0
    %380 = vmatprep.subr.mxu0 0.0
    %381 = vmatpush2.msra.mxu0 0.0
    %382 = vmatprep.subr.mxu0 0.0
    %383 = vmatpush2.msra.mxu0 0.0
    %384 = vmatprep.subr.mxu0 0.0
    %385 = vmatpush2.msra.mxu0 0.0
    %386 = vmatprep.subr.mxu0 0.0
    %387 = vmatpush2.msra.mxu0 0.0
    %388 = vmatprep.mubr.f32.mxu0 0.0
    %389 = vmatmul.mubr.f32.gmra.mxu0 %v313
    %v390 = vpop.f32.mrf.mxu0
    %v391 = vadd.f32 0.0, %v390
    %v392 = vpop.f32.mrf.mxu0
    %393 = vmatprep.mubr.f32.mxu0 0.0
    %394 = vmatmul.mubr.f32.gmra.mxu0 %v316
    %v395 = vpop.f32.mrf.mxu0
    %v396 = vadd.f32 0.0, %v395
    %v397 = vpop.f32.mrf.mxu0
    %398 = vmatprep.mubr.f32.mxu0 0.0
    %399 = vmatmul.mubr.f32.gmra.mxu0 %v319
    %v400 = vpop.f32.mrf.mxu0
    %v401 = vadd.f32 0.0, %v400
    %v402 = vpop.f32.mrf.mxu0
    %403 = vmatprep.mubr.f32.mxu0 0.0
    %404 = vmatmul.mubr.f32.gmra.mxu0 %v322
    %v405 = vpop.f32.mrf.mxu0
    %v406 = vadd.f32 0.0, %v405
    %v407 = vpop.f32.mrf.mxu0
    %408 = vdwg.mxu0
    %v409 = vadd.f32 %v274, %v391
    %v410 = vadd.f32 %v279, %v396
    %v411 = vadd.f32 %v284, %v401
    %v412 = vadd.f32 %v289, %v406
    %v413 = vld [vmem:[%s76 + $0x2] sm:$0xff]
    %v414 = vld [vmem:[%s76 + $0xa] sm:$0xff]
    %v415 = vld [vmem:[%s76 + $0x12] sm:$0xff]
    %v416 = vld [vmem:[%s76 + $0x1a] sm:$0x3]
    %s417 = scalar_lea.vmem %s2, 360
    %v418 = vld [vmem:[%s417] sm:$0xff]
    %v419 = vld [vmem:[%s417 + $0x8] sm:$0xff]
    %v420 = vld [vmem:[%s417 + $0x10] sm:$0xff]
    %v421 = vld [vmem:[%s417 + $0x18] sm:$0xff]
    %v422 = vld [vmem:[%s417 + $0x20] sm:$0xff]
    %v423 = vld [vmem:[%s417 + $0x28] sm:$0xff]
    %v424 = vld [vmem:[%s417 + $0x30] sm:$0xff]
    %v425 = vld [vmem:[%s417 + $0x38] sm:$0xff]
    %v426 = vld [vmem:[%s417 + $0x40] sm:$0xff]
    %v427 = vld [vmem:[%s417 + $0x48] sm:$0xff]
    %v428 = vld [vmem:[%s417 + $0x50] sm:$0xff]
    %v429 = vld [vmem:[%s417 + $0x58] sm:$0xff]
    %v430 = vld [vmem:[%s417 + $0x60] sm:$0xff]
    %v431 = vld [vmem:[%s417 + $0x68] sm:$0xff]
    %v432 = vld [vmem:[%s417 + $0x70] sm:$0xff]
    %v434 = vsel %vm97, %v413, 0
    %v437 = vsel %vm97, %v414, 0
    %v440 = vsel %vm97, %v415, 0
    %v443 = vsel %vm97, %v416, 0
    %445 = vmatprep.subr.mxu0 0.0
    %446 = vmatpush1.msra.mxu0 0.0
    %447 = vmatprep.subr.mxu0 0.0
    %448 = vmatpush1.msra.mxu0 %v432
    %449 = vmatprep.subr.mxu0 0.0
    %450 = vmatpush1.msra.mxu0 %v431
    %451 = vmatprep.subr.mxu0 0.0
    %452 = vmatpush1.msra.mxu0 %v430
    %453 = vmatprep.subr.mxu0 0.0
    %454 = vmatpush1.msra.mxu0 %v429
    %455 = vmatprep.subr.mxu0 0.0
    %456 = vmatpush1.msra.mxu0 %v428
    %457 = vmatprep.subr.mxu0 0.0
    %458 = vmatpush1.msra.mxu0 %v427
    %459 = vmatprep.subr.mxu0 0.0
    %460 = vmatpush1.msra.mxu0 %v426
    %461 = vmatprep.subr.mxu0 0.0
    %462 = vmatpush1.msra.mxu0 %v425
    %463 = vmatprep.subr.mxu0 0.0
    %464 = vmatpush1.msra.mxu0 %v424
    %465 = vmatprep.subr.mxu0 0.0
    %466 = vmatpush1.msra.mxu0 %v423
    %467 = vmatprep.subr.mxu0 0.0
    %468 = vmatpush1.msra.mxu0 %v422
    %469 = vmatprep.subr.mxu0 0.0
    %470 = vmatpush1.msra.mxu0 %v421
    %471 = vmatprep.subr.mxu0 0.0
    %472 = vmatpush1.msra.mxu0 %v420
    %473 = vmatprep.subr.mxu0 0.0
    %474 = vmatpush1.msra.mxu0 %v419
    %475 = vmatprep.subr.mxu0 0.0
    %476 = vmatpush1.msra.mxu0 %v418
    %477 = vmatprep.subr.mxu0 0.0
    %478 = vmatpush2.msra.mxu0 0.0
    %479 = vmatprep.subr.mxu0 0.0
    %480 = vmatpush2.msra.mxu0 0.0
    %481 = vmatprep.subr.mxu0 0.0
    %482 = vmatpush2.msra.mxu0 0.0
    %483 = vmatprep.subr.mxu0 0.0
    %484 = vmatpush2.msra.mxu0 0.0
    %485 = vmatprep.subr.mxu0 0.0
    %486 = vmatpush2.msra.mxu0 0.0
    %487 = vmatprep.subr.mxu0 0.0
    %488 = vmatpush2.msra.mxu0 0.0
    %489 = vmatprep.subr.mxu0 0.0
    %490 = vmatpush2.msra.mxu0 0.0
    %491 = vmatprep.subr.mxu0 0.0
    %492 = vmatpush2.msra.mxu0 0.0
    %493 = vmatprep.subr.mxu0 0.0
    %494 = vmatpush2.msra.mxu0 0.0
    %495 = vmatprep.subr.mxu0 0.0
    %496 = vmatpush2.msra.mxu0 0.0
    %497 = vmatprep.subr.mxu0 0.0
    %498 = vmatpush2.msra.mxu0 0.0
    %499 = vmatprep.subr.mxu0 0.0
    %500 = vmatpush2.msra.mxu0 0.0
    %501 = vmatprep.subr.mxu0 0.0
    %502 = vmatpush2.msra.mxu0 0.0
    %503 = vmatprep.subr.mxu0 0.0
    %504 = vmatpush2.msra.mxu0 0.0
    %505 = vmatprep.subr.mxu0 0.0
    %506 = vmatpush2.msra.mxu0 0.0
    %507 = vmatprep.subr.mxu0 0.0
    %508 = vmatpush2.msra.mxu0 0.0
    %509 = vmatprep.mubr.f32.mxu0 0.0
    %510 = vmatmul.mubr.f32.gmra.mxu0 %v434
    %v511 = vpop.f32.mrf.mxu0
    %v512 = vadd.f32 0.0, %v511
    %v513 = vpop.f32.mrf.mxu0
    %514 = vmatprep.mubr.f32.mxu0 0.0
    %515 = vmatmul.mubr.f32.gmra.mxu0 %v437
    %v516 = vpop.f32.mrf.mxu0
    %v517 = vadd.f32 0.0, %v516
    %v518 = vpop.f32.mrf.mxu0
    %519 = vmatprep.mubr.f32.mxu0 0.0
    %520 = vmatmul.mubr.f32.gmra.mxu0 %v440
    %v521 = vpop.f32.mrf.mxu0
    %v522 = vadd.f32 0.0, %v521
    %v523 = vpop.f32.mrf.mxu0
    %524 = vmatprep.mubr.f32.mxu0 0.0
    %525 = vmatmul.mubr.f32.gmra.mxu0 %v443
    %v526 = vpop.f32.mrf.mxu0
    %v527 = vadd.f32 0.0, %v526
    %v528 = vpop.f32.mrf.mxu0
    %529 = vdwg.mxu0
    %v530 = vadd.f32 %v409, %v512
    %v531 = vadd.f32 %v410, %v517
    %v532 = vadd.f32 %v411, %v522
    %v533 = vadd.f32 %v412, %v527
    %v534 = vld [vmem:[%s0 + $0x4] sm:$0xff]
    %v535 = vld [vmem:[%s0 + $0xc] sm:$0xff]
    %v536 = vld [vmem:[%s0 + $0x14] sm:$0xff]
    %v537 = vld [vmem:[%s0 + $0x1c] sm:$0x3]
    %s538 = scalar_lea.vmem %s2, 480
    %v539 = vld [vmem:[%s538] sm:$0xff]
    %v540 = vld [vmem:[%s538 + $0x8] sm:$0xff]
    %v541 = vld [vmem:[%s538 + $0x10] sm:$0xff]
    %v542 = vld [vmem:[%s538 + $0x18] sm:$0xff]
    %v543 = vld [vmem:[%s538 + $0x20] sm:$0xff]
    %v544 = vld [vmem:[%s538 + $0x28] sm:$0xff]
    %v545 = vld [vmem:[%s538 + $0x30] sm:$0xff]
    %v546 = vld [vmem:[%s538 + $0x38] sm:$0xff]
    %v547 = vld [vmem:[%s538 + $0x40] sm:$0xff]
    %v548 = vld [vmem:[%s538 + $0x48] sm:$0xff]
    %v549 = vld [vmem:[%s538 + $0x50] sm:$0xff]
    %v550 = vld [vmem:[%s538 + $0x58] sm:$0xff]
    %v551 = vld [vmem:[%s538 + $0x60] sm:$0xff]
    %v552 = vld [vmem:[%s538 + $0x68] sm:$0xff]
    %v553 = vld [vmem:[%s538 + $0x70] sm:$0xff]
    %v555 = vsel %vm97, %v534, 0
    %v558 = vsel %vm97, %v535, 0
    %v561 = vsel %vm97, %v536, 0
    %v564 = vsel %vm97, %v537, 0
    %566 = vmatprep.subr.mxu0 0.0
    %567 = vmatpush1.msra.mxu0 0.0
    %568 = vmatprep.subr.mxu0 0.0
    %569 = vmatpush1.msra.mxu0 %v553
    %570 = vmatprep.subr.mxu0 0.0
    %571 = vmatpush1.msra.mxu0 %v552
    %572 = vmatprep.subr.mxu0 0.0
    %573 = vmatpush1.msra.mxu0 %v551
    %574 = vmatprep.subr.mxu0 0.0
    %575 = vmatpush1.msra.mxu0 %v550
    %576 = vmatprep.subr.mxu0 0.0
    %577 = vmatpush1.msra.mxu0 %v549
    %578 = vmatprep.subr.mxu0 0.0
    %579 = vmatpush1.msra.mxu0 %v548
    %580 = vmatprep.subr.mxu0 0.0
    %581 = vmatpush1.msra.mxu0 %v547
    %582 = vmatprep.subr.mxu0 0.0
    %583 = vmatpush1.msra.mxu0 %v546
    %584 = vmatprep.subr.mxu0 0.0
    %585 = vmatpush1.msra.mxu0 %v545
    %586 = vmatprep.subr.mxu0 0.0
    %587 = vmatpush1.msra.mxu0 %v544
    %588 = vmatprep.subr.mxu0 0.0
    %589 = vmatpush1.msra.mxu0 %v543
    %590 = vmatprep.subr.mxu0 0.0
    %591 = vmatpush1.msra.mxu0 %v542
    %592 = vmatprep.subr.mxu0 0.0
    %593 = vmatpush1.msra.mxu0 %v541
    %594 = vmatprep.subr.mxu0 0.0
    %595 = vmatpush1.msra.mxu0 %v540
    %596 = vmatprep.subr.mxu0 0.0
    %597 = vmatpush1.msra.mxu0 %v539
    %598 = vmatprep.subr.mxu0 0.0
    %599 = vmatpush2.msra.mxu0 0.0
    %600 = vmatprep.subr.mxu0 0.0
    %601 = vmatpush2.msra.mxu0 0.0
    %602 = vmatprep.subr.mxu0 0.0
    %603 = vmatpush2.msra.mxu0 0.0
    %604 = vmatprep.subr.mxu0 0.0
    %605 = vmatpush2.msra.mxu0 0.0
    %606 = vmatprep.subr.mxu0 0.0
    %607 = vmatpush2.msra.mxu0 0.0
    %608 = vmatprep.subr.mxu0 0.0
    %609 = vmatpush2.msra.mxu0 0.0
    %610 = vmatprep.subr.mxu0 0.0
    %611 = vmatpush2.msra.mxu0 0.0
    %612 = vmatprep.subr.mxu0 0.0
    %613 = vmatpush2.msra.mxu0 0.0
    %614 = vmatprep.subr.mxu0 0.0
    %615 = vmatpush2.msra.mxu0 0.0
    %616 = vmatprep.subr.mxu0 0.0
    %617 = vmatpush2.msra.mxu0 0.0
    %618 = vmatprep.subr.mxu0 0.0
    %619 = vmatpush2.msra.mxu0 0.0
    %620 = vmatprep.subr.mxu0 0.0
    %621 = vmatpush2.msra.mxu0 0.0
    %622 = vmatprep.subr.mxu0 0.0
    %623 = vmatpush2.msra.mxu0 0.0
    %624 = vmatprep.subr.mxu0 0.0
    %625 = vmatpush2.msra.mxu0 0.0
    %626 = vmatprep.subr.mxu0 0.0
    %627 = vmatpush2.msra.mxu0 0.0
    %628 = vmatprep.subr.mxu0 0.0
    %629 = vmatpush2.msra.mxu0 0.0
    %630 = vmatprep.mubr.f32.mxu0 0.0
    %631 = vmatmul.mubr.f32.gmra.mxu0 %v555
    %v632 = vpop.f32.mrf.mxu0
    %v633 = vadd.f32 0.0, %v632
    %v634 = vpop.f32.mrf.mxu0
    %635 = vmatprep.mubr.f32.mxu0 0.0
    %636 = vmatmul.mubr.f32.gmra.mxu0 %v558
    %v637 = vpop.f32.mrf.mxu0
    %v638 = vadd.f32 0.0, %v637
    %v639 = vpop.f32.mrf.mxu0
    %640 = vmatprep.mubr.f32.mxu0 0.0
    %641 = vmatmul.mubr.f32.gmra.mxu0 %v561
    %v642 = vpop.f32.mrf.mxu0
    %v643 = vadd.f32 0.0, %v642
    %v644 = vpop.f32.mrf.mxu0
    %645 = vmatprep.mubr.f32.mxu0 0.0
    %646 = vmatmul.mubr.f32.gmra.mxu0 %v564
    %v647 = vpop.f32.mrf.mxu0
    %v648 = vadd.f32 0.0, %v647
    %v649 = vpop.f32.mrf.mxu0
    %650 = vdwg.mxu0
    %v651 = vadd.f32 %v530, %v633
    %v652 = vadd.f32 %v531, %v638
    %v653 = vadd.f32 %v532, %v643
    %v654 = vadd.f32 %v533, %v648
    %v655 = vld [vmem:[%s3] sm:$0x1]
    %v657 = vlaneseq
    %v658 = vshrl.u32 %v657, 7
    %v659 = vsub.s32 0, %v658
    %v660 = vrot.slane %v655, %v659
    %v662 = vadd.f32 %v651, %v660
    %v663 = vadd.f32 %v652, %v660
    %v664 = vadd.f32 %v653, %v660
    %v665 = vadd.f32 %v654, %v660
    %v666 = vmax.f32 %v662, 0.0
    %v667 = vmax.f32 %v663, 0.0
    %v668 = vmax.f32 %v664, 0.0
    %v669 = vmax.f32 %v665, 0.0
    %v670 = vld [vmem:[%s4] sm:$0xff]
    %v671 = vld [vmem:[%s4 + $0x8] sm:$0xff]
    %v672 = vld [vmem:[%s4 + $0x10] sm:$0xff]
    %v673 = vld [vmem:[%s4 + $0x18] sm:$0xff]
    %v674 = vld [vmem:[%s4 + $0x20] sm:$0xff]
    %v675 = vld [vmem:[%s4 + $0x28] sm:$0xff]
    %v676 = vld [vmem:[%s4 + $0x30] sm:$0xf]
    %s677 = scalar_lea.vmem %s4, 56
    %v678 = vld [vmem:[%s677] sm:$0xff]
    %v679 = vld [vmem:[%s677 + $0x8] sm:$0xff]
    %v680 = vld [vmem:[%s677 + $0x10] sm:$0xff]
    %v681 = vld [vmem:[%s677 + $0x18] sm:$0xff]
    %v682 = vld [vmem:[%s677 + $0x20] sm:$0xff]
    %v683 = vld [vmem:[%s677 + $0x28] sm:$0xff]
    %v684 = vld [vmem:[%s677 + $0x30] sm:$0xf]
    %vm688 = vcmask 1045504
    %v689 = vrot.slane %v666, 2
    %v690 = vrot.slane %v667, 2
    %v691 = vsel %vm688, %v689, %v690
    %v692 = vrot.slane %v668, 2
    %v693 = vsel %vm688, %v690, %v692
    %vm694 = vcmask 424960
    %v695 = vsel %vm694, %v691, 0
    %v697 = vsel %vm694, %v693, 0
    %v699 = vsel %vm694, %v692, 0
    %vm701 = vcmask 1043456
    %v703 = vsel %vm701, %v684, 0
    %705 = vmatprep.subr.mxu0 0.0
    %706 = vmatpush1.msra.mxu0 0.0
    %707 = vmatprep.subr.mxu0 0.0
    %708 = vmatpush1.msra.mxu0 0.0
    %709 = vmatprep.subr.mxu0 0.0
    %710 = vmatpush1.msra.mxu0 0.0
    %711 = vmatprep.subr.mxu0 0.0
    %712 = vmatpush1.msra.mxu0 0.0
    %713 = vmatprep.subr.mxu0 0.0
    %714 = vmatpush1.msra.mxu0 0.0
    %715 = vmatprep.subr.mxu0 0.0
    %716 = vmatpush1.msra.mxu0 0.0
    %717 = vmatprep.subr.mxu0 0.0
    %718 = vmatpush1.msra.mxu0 0.0
    %719 = vmatprep.subr.mxu0 0.0
    %720 = vmatpush1.msra.mxu0 0.0
    %721 = vmatprep.subr.mxu0 0.0
    %722 = vmatpush1.msra.mxu0 0.0
    %723 = vmatprep.subr.mxu0 0.0
    %724 = vmatpush1.msra.mxu0 %v703
    %725 = vmatprep.subr.mxu0 0.0
    %726 = vmatpush1.msra.mxu0 %v683
    %727 = vmatprep.subr.mxu0 0.0
    %728 = vmatpush1.msra.mxu0 %v682
    %729 = vmatprep.subr.mxu0 0.0
    %730 = vmatpush1.msra.mxu0 %v681
    %731 = vmatprep.subr.mxu0 0.0
    %732 = vmatpush1.msra.mxu0 %v680
    %733 = vmatprep.subr.mxu0 0.0
    %734 = vmatpush1.msra.mxu0 %v679
    %735 = vmatprep.subr.mxu0 0.0
    %736 = vmatpush1.msra.mxu0 %v678
    %737 = vmatprep.subr.mxu0 0.0
    %738 = vmatpush2.msra.mxu0 0.0
    %739 = vmatprep.subr.mxu0 0.0
    %740 = vmatpush2.msra.mxu0 0.0
    %741 = vmatprep.subr.mxu0 0.0
    %742 = vmatpush2.msra.mxu0 0.0
    %743 = vmatprep.subr.mxu0 0.0
    %744 = vmatpush2.msra.mxu0 0.0
    %745 = vmatprep.subr.mxu0 0.0
    %746 = vmatpush2.msra.mxu0 0.0
    %747 = vmatprep.subr.mxu0 0.0
    %748 = vmatpush2.msra.mxu0 0.0
    %749 = vmatprep.subr.mxu0 0.0
    %750 = vmatpush2.msra.mxu0 0.0
    %751 = vmatprep.subr.mxu0 0.0
    %752 = vmatpush2.msra.mxu0 0.0
    %753 = vmatprep.subr.mxu0 0.0
    %754 = vmatpush2.msra.mxu0 0.0
    %755 = vmatprep.subr.mxu0 0.0
    %756 = vmatpush2.msra.mxu0 0.0
    %757 = vmatprep.subr.mxu0 0.0
    %758 = vmatpush2.msra.mxu0 0.0
    %759 = vmatprep.subr.mxu0 0.0
    %760 = vmatpush2.msra.mxu0 0.0
    %761 = vmatprep.subr.mxu0 0.0
    %762 = vmatpush2.msra.mxu0 0.0
    %763 = vmatprep.subr.mxu0 0.0
    %764 = vmatpush2.msra.mxu0 0.0
    %765 = vmatprep.subr.mxu0 0.0
    %766 = vmatpush2.msra.mxu0 0.0
    %767 = vmatprep.subr.mxu0 0.0
    %768 = vmatpush2.msra.mxu0 0.0
    %769 = vmatprep.mubr.f32.mxu0 0.0
    %770 = vmatmul.mubr.f32.gmra.mxu0 %v695
    %v771 = vpop.f32.mrf.mxu0
    %v772 = vadd.f32 0.0, %v771
    %v773 = vpop.f32.mrf.mxu0
    %774 = vmatprep.mubr.f32.mxu0 0.0
    %775 = vmatmul.mubr.f32.gmra.mxu0 %v697
    %v776 = vpop.f32.mrf.mxu0
    %v777 = vadd.f32 0.0, %v776
    %v778 = vpop.f32.mrf.mxu0
    %779 = vmatprep.mubr.f32.mxu0 0.0
    %780 = vmatmul.mubr.f32.gmra.mxu0 %v699
    %v781 = vpop.f32.mrf.mxu0
    %v782 = vadd.f32 0.0, %v781
    %v783 = vpop.f32.mrf.mxu0
    %784 = vdwg.mxu0
    %v785 = vsel %vm694, %v666, 0
    %v787 = vsel %vm694, %v667, 0
    %v789 = vsel %vm694, %v668, 0
    %v792 = vsel %vm701, %v676, 0
    %794 = vmatprep.subr.mxu0 0.0
    %795 = vmatpush1.msra.mxu0 0.0
    %796 = vmatprep.subr.mxu0 0.0
    %797 = vmatpush1.msra.mxu0 0.0
    %798 = vmatprep.subr.mxu0 0.0
    %799 = vmatpush1.msra.mxu0 0.0
    %800 = vmatprep.subr.mxu0 0.0
    %801 = vmatpush1.msra.mxu0 0.0
    %802 = vmatprep.subr.mxu0 0.0
    %803 = vmatpush1.msra.mxu0 0.0
    %804 = vmatprep.subr.mxu0 0.0
    %805 = vmatpush1.msra.mxu0 0.0
    %806 = vmatprep.subr.mxu0 0.0
    %807 = vmatpush1.msra.mxu0 0.0
    %808 = vmatprep.subr.mxu0 0.0
    %809 = vmatpush1.msra.mxu0 0.0
    %810 = vmatprep.subr.mxu0 0.0
    %811 = vmatpush1.msra.mxu0 0.0
    %812 = vmatprep.subr.mxu0 0.0
    %813 = vmatpush1.msra.mxu0 %v792
    %814 = vmatprep.subr.mxu0 0.0
    %815 = vmatpush1.msra.mxu0 %v675
    %816 = vmatprep.subr.mxu0 0.0
    %817 = vmatpush1.msra.mxu0 %v674
    %818 = vmatprep.subr.mxu0 0.0
    %819 = vmatpush1.msra.mxu0 %v673
    %820 = vmatprep.subr.mxu0 0.0
    %821 = vmatpush1.msra.mxu0 %v672
    %822 = vmatprep.subr.mxu0 0.0
    %823 = vmatpush1.msra.mxu0 %v671
    %824 = vmatprep.subr.mxu0 0.0
    %825 = vmatpush1.msra.mxu0 %v670
    %826 = vmatprep.subr.mxu0 0.0
    %827 = vmatpush2.msra.mxu0 0.0
    %828 = vmatprep.subr.mxu0 0.0
    %829 = vmatpush2.msra.mxu0 0.0
    %830 = vmatprep.subr.mxu0 0.0
    %831 = vmatpush2.msra.mxu0 0.0
    %832 = vmatprep.subr.mxu0 0.0
    %833 = vmatpush2.msra.mxu0 0.0
    %834 = vmatprep.subr.mxu0 0.0
    %835 = vmatpush2.msra.mxu0 0.0
    %836 = vmatprep.subr.mxu0 0.0
    %837 = vmatpush2.msra.mxu0 0.0
    %838 = vmatprep.subr.mxu0 0.0
    %839 = vmatpush2.msra.mxu0 0.0
    %840 = vmatprep.subr.mxu0 0.0
    %841 = vmatpush2.msra.mxu0 0.0
    %842 = vmatprep.subr.mxu0 0.0
    %843 = vmatpush2.msra.mxu0 0.0
    %844 = vmatprep.subr.mxu0 0.0
    %845 = vmatpush2.msra.mxu0 0.0
    %846 = vmatprep.subr.mxu0 0.0
    %847 = vmatpush2.msra.mxu0 0.0
    %848 = vmatprep.subr.mxu0 0.0
    %849 = vmatpush2.msra.mxu0 0.0
    %850 = vmatprep.subr.mxu0 0.0
    %851 = vmatpush2.msra.mxu0 0.0
    %852 = vmatprep.subr.mxu0 0.0
    %853 = vmatpush2.msra.mxu0 0.0
    %854 = vmatprep.subr.mxu0 0.0
    %855 = vmatpush2.msra.mxu0 0.0
    %856 = vmatprep.subr.mxu0 0.0
    %857 = vmatpush2.msra.mxu0 0.0
    %858 = vmatprep.mubr.f32.mxu0 0.0
    %859 = vmatmul.mubr.f32.gmra.mxu0 %v785
    %v860 = vpop.f32.mrf.mxu0
    %v861 = vadd.f32 %v772, %v860
    %v862 = vpop.f32.mrf.mxu0
    %863 = vmatprep.mubr.f32.mxu0 0.0
    %864 = vmatmul.mubr.f32.gmra.mxu0 %v787
    %v865 = vpop.f32.mrf.mxu0
    %v866 = vadd.f32 %v777, %v865
    %v867 = vpop.f32.mrf.mxu0
    %868 = vmatprep.mubr.f32.mxu0 0.0
    %869 = vmatmul.mubr.f32.gmra.mxu0 %v789
    %v870 = vpop.f32.mrf.mxu0
    %v871 = vadd.f32 %v782, %v870
    %v872 = vpop.f32.mrf.mxu0
    %873 = vdwg.mxu0
    %s874 = scalar_lea.vmem %s4, 112
    %v875 = vld [vmem:[%s874] sm:$0xff]
    %v876 = vld [vmem:[%s874 + $0x8] sm:$0xff]
    %v877 = vld [vmem:[%s874 + $0x10] sm:$0xff]
    %v878 = vld [vmem:[%s874 + $0x18] sm:$0xff]
    %v879 = vld [vmem:[%s874 + $0x20] sm:$0xff]
    %v880 = vld [vmem:[%s874 + $0x28] sm:$0xff]
    %v881 = vld [vmem:[%s874 + $0x30] sm:$0xf]
    %v883 = vrot.slane %v666, 4
    %v884 = vrot.slane %v667, 4
    %v885 = vsel %vm701, %v883, %v884
    %v886 = vrot.slane %v668, 4
    %v887 = vsel %vm701, %v884, %v886
    %v888 = vrot.slane %v669, 4
    %v889 = vsel %vm701, %v886, %v888
    %v890 = vsel %vm694, %v885, 0
    %v892 = vsel %vm694, %v887, 0
    %v894 = vsel %vm694, %v889, 0
    %v897 = vsel %vm701, %v881, 0
    %899 = vmatprep.subr.mxu0 0.0
    %900 = vmatpush1.msra.mxu0 0.0
    %901 = vmatprep.subr.mxu0 0.0
    %902 = vmatpush1.msra.mxu0 0.0
    %903 = vmatprep.subr.mxu0 0.0
    %904 = vmatpush1.msra.mxu0 0.0
    %905 = vmatprep.subr.mxu0 0.0
    %906 = vmatpush1.msra.mxu0 0.0
    %907 = vmatprep.subr.mxu0 0.0
    %908 = vmatpush1.msra.mxu0 0.0
    %909 = vmatprep.subr.mxu0 0.0
    %910 = vmatpush1.msra.mxu0 0.0
    %911 = vmatprep.subr.mxu0 0.0
    %912 = vmatpush1.msra.mxu0 0.0
    %913 = vmatprep.subr.mxu0 0.0
    %914 = vmatpush1.msra.mxu0 0.0
    %915 = vmatprep.subr.mxu0 0.0
    %916 = vmatpush1.msra.mxu0 0.0
    %917 = vmatprep.subr.mxu0 0.0
    %918 = vmatpush1.msra.mxu0 %v897
    %919 = vmatprep.subr.mxu0 0.0
    %920 = vmatpush1.msra.mxu0 %v880
    %921 = vmatprep.subr.mxu0 0.0
    %922 = vmatpush1.msra.mxu0 %v879
    %923 = vmatprep.subr.mxu0 0.0
    %924 = vmatpush1.msra.mxu0 %v878
    %925 = vmatprep.subr.mxu0 0.0
    %926 = vmatpush1.msra.mxu0 %v877
    %927 = vmatprep.subr.mxu0 0.0
    %928 = vmatpush1.msra.mxu0 %v876
    %929 = vmatprep.subr.mxu0 0.0
    %930 = vmatpush1.msra.mxu0 %v875
    %931 = vmatprep.subr.mxu0 0.0
    %932 = vmatpush2.msra.mxu0 0.0
    %933 = vmatprep.subr.mxu0 0.0
    %934 = vmatpush2.msra.mxu0 0.0
    %935 = vmatprep.subr.mxu0 0.0
    %936 = vmatpush2.msra.mxu0 0.0
    %937 = vmatprep.subr.mxu0 0.0
    %938 = vmatpush2.msra.mxu0 0.0
    %939 = vmatprep.subr.mxu0 0.0
    %940 = vmatpush2.msra.mxu0 0.0
    %941 = vmatprep.subr.mxu0 0.0
    %942 = vmatpush2.msra.mxu0 0.0
    %943 = vmatprep.subr.mxu0 0.0
    %944 = vmatpush2.msra.mxu0 0.0
    %945 = vmatprep.subr.mxu0 0.0
    %946 = vmatpush2.msra.mxu0 0.0
    %947 = vmatprep.subr.mxu0 0.0
    %948 = vmatpush2.msra.mxu0 0.0
    %949 = vmatprep.subr.mxu0 0.0
    %950 = vmatpush2.msra.mxu0 0.0
    %951 = vmatprep.subr.mxu0 0.0
    %952 = vmatpush2.msra.mxu0 0.0
    %953 = vmatprep.subr.mxu0 0.0
    %954 = vmatpush2.msra.mxu0 0.0
    %955 = vmatprep.subr.mxu0 0.0
    %956 = vmatpush2.msra.mxu0 0.0
    %957 = vmatprep.subr.mxu0 0.0
    %958 = vmatpush2.msra.mxu0 0.0
    %959 = vmatprep.subr.mxu0 0.0
    %960 = vmatpush2.msra.mxu0 0.0
    %961 = vmatprep.subr.mxu0 0.0
    %962 = vmatpush2.msra.mxu0 0.0
    %963 = vmatprep.mubr.f32.mxu0 0.0
    %964 = vmatmul.mubr.f32.gmra.mxu0 %v890
    %v965 = vpop.f32.mrf.mxu0
    %v966 = vadd.f32 0.0, %v965
    %v967 = vpop.f32.mrf.mxu0
    %968 = vmatprep.mubr.f32.mxu0 0.0
    %969 = vmatmul.mubr.f32.gmra.mxu0 %v892
    %v970 = vpop.f32.mrf.mxu0
    %v971 = vadd.f32 0.0, %v970
    %v972 = vpop.f32.mrf.mxu0
    %973 = vmatprep.mubr.f32.mxu0 0.0
    %974 = vmatmul.mubr.f32.gmra.mxu0 %v894
    %v975 = vpop.f32.mrf.mxu0
    %v976 = vadd.f32 0.0, %v975
    %v977 = vpop.f32.mrf.mxu0
    %978 = vdwg.mxu0
    %v979 = vadd.f32 %v861, %v966
    %v980 = vadd.f32 %v866, %v971
    %v981 = vadd.f32 %v871, %v976
    %v982 = vld [vmem:[%s5] sm:$0x1]
    %v984 = vlaneseq
    %v985 = vshrl.u32 %v984, 7
    %v986 = vsub.s32 0, %v985
    %v987 = vrot.slane %v982, %v986
    %v989 = vadd.f32 %v979, %v987
    %v990 = vadd.f32 %v980, %v987
    %v991 = vadd.f32 %v981, %v987
    %v992 = vmax.f32 %v989, 0.0
    %v993 = vmax.f32 %v990, 0.0
    %v994 = vmax.f32 %v991, 0.0
    %v995 = vld [vmem:[%s6] sm:$0xff]
    %v996 = vld [vmem:[%s6 + $0x8] sm:$0xff]
    %v997 = vld [vmem:[%s6 + $0x10] sm:$0xff]
    %v998 = vld [vmem:[%s6 + $0x18] sm:$0xff]
    %v999 = vld [vmem:[%s6 + $0x20] sm:$0xff]
    %v1000 = vld [vmem:[%s6 + $0x28] sm:$0xff]
    %v1001 = vld [vmem:[%s6 + $0x30] sm:$0xff]
    %v1002 = vld [vmem:[%s6 + $0x38] sm:$0xff]
    %v1003 = vld [vmem:[%s6 + $0x40] sm:$0xff]
    %v1004 = vld [vmem:[%s6 + $0x48] sm:$0xff]
    %v1005 = vld [vmem:[%s6 + $0x50] sm:$0xff]
    %s1006 = scalar_lea.vmem %s6, 88
    %v1007 = vld [vmem:[%s1006] sm:$0xff]
    %v1008 = vld [vmem:[%s1006 + $0x8] sm:$0xff]
    %v1009 = vld [vmem:[%s1006 + $0x10] sm:$0xff]
    %v1010 = vld [vmem:[%s1006 + $0x18] sm:$0xff]
    %v1011 = vld [vmem:[%s1006 + $0x20] sm:$0xff]
    %v1012 = vld [vmem:[%s1006 + $0x28] sm:$0xff]
    %v1013 = vld [vmem:[%s1006 + $0x30] sm:$0xff]
    %v1014 = vld [vmem:[%s1006 + $0x38] sm:$0xff]
    %v1015 = vld [vmem:[%s1006 + $0x40] sm:$0xff]
    %v1016 = vld [vmem:[%s1006 + $0x48] sm:$0xff]
    %v1017 = vld [vmem:[%s1006 + $0x50] sm:$0xff]
    %v1019 = vrot.slane %v992, 2
    %vm1020 = vcmask 719872
    %v1021 = vsel %vm1020, %v1019, 0
    %1023 = vmatprep.subr.mxu0 0.0
    %1024 = vmatpush1.msra.mxu0 0.0
    %1025 = vmatprep.subr.mxu0 0.0
    %1026 = vmatpush1.msra.mxu0 0.0
    %1027 = vmatprep.subr.mxu0 0.0
    %1028 = vmatpush1.msra.mxu0 0.0
    %1029 = vmatprep.subr.mxu0 0.0
    %1030 = vmatpush1.msra.mxu0 0.0
    %1031 = vmatprep.subr.mxu0 0.0
    %1032 = vmatpush1.msra.mxu0 0.0
    %1033 = vmatprep.subr.mxu0 0.0
    %1034 = vmatpush1.msra.mxu0 %v1017
    %1035 = vmatprep.subr.mxu0 0.0
    %1036 = vmatpush1.msra.mxu0 %v1016
    %1037 = vmatprep.subr.mxu0 0.0
    %1038 = vmatpush1.msra.mxu0 %v1015
    %1039 = vmatprep.subr.mxu0 0.0
    %1040 = vmatpush1.msra.mxu0 %v1014
    %1041 = vmatprep.subr.mxu0 0.0
    %1042 = vmatpush1.msra.mxu0 %v1013
    %1043 = vmatprep.subr.mxu0 0.0
    %1044 = vmatpush1.msra.mxu0 %v1012
    %1045 = vmatprep.subr.mxu0 0.0
    %1046 = vmatpush1.msra.mxu0 %v1011
    %1047 = vmatprep.subr.mxu0 0.0
    %1048 = vmatpush1.msra.mxu0 %v1010
    %1049 = vmatprep.subr.mxu0 0.0
    %1050 = vmatpush1.msra.mxu0 %v1009
    %1051 = vmatprep.subr.mxu0 0.0
    %1052 = vmatpush1.msra.mxu0 %v1008
    %1053 = vmatprep.subr.mxu0 0.0
    %1054 = vmatpush1.msra.mxu0 %v1007
    %1055 = vmatprep.subr.mxu0 0.0
    %1056 = vmatpush2.msra.mxu0 0.0
    %1057 = vmatprep.subr.mxu0 0.0
    %1058 = vmatpush2.msra.mxu0 0.0
    %1059 = vmatprep.subr.mxu0 0.0
    %1060 = vmatpush2.msra.mxu0 0.0
    %1061 = vmatprep.subr.mxu0 0.0
    %1062 = vmatpush2.msra.mxu0 0.0
    %1063 = vmatprep.subr.mxu0 0.0
    %1064 = vmatpush2.msra.mxu0 0.0
    %1065 = vmatprep.subr.mxu0 0.0
    %1066 = vmatpush2.msra.mxu0 0.0
    %1067 = vmatprep.subr.mxu0 0.0
    %1068 = vmatpush2.msra.mxu0 0.0
    %1069 = vmatprep.subr.mxu0 0.0
    %1070 = vmatpush2.msra.mxu0 0.0
    %1071 = vmatprep.subr.mxu0 0.0
    %1072 = vmatpush2.msra.mxu0 0.0
    %1073 = vmatprep.subr.mxu0 0.0
    %1074 = vmatpush2.msra.mxu0 0.0
    %1075 = vmatprep.subr.mxu0 0.0
    %1076 = vmatpush2.msra.mxu0 0.0
    %1077 = vmatprep.subr.mxu0 0.0
    %1078 = vmatpush2.msra.mxu0 0.0
    %1079 = vmatprep.subr.mxu0 0.0
    %1080 = vmatpush2.msra.mxu0 0.0
    %1081 = vmatprep.subr.mxu0 0.0
    %1082 = vmatpush2.msra.mxu0 0.0
    %1083 = vmatprep.subr.mxu0 0.0
    %1084 = vmatpush2.msra.mxu0 0.0
    %1085 = vmatprep.subr.mxu0 0.0
    %1086 = vmatpush2.msra.mxu0 0.0
    %1087 = vmatprep.mubr.f32.mxu0 0.0
    %1088 = vmatmul.mubr.f32.gmra.mxu0 %v1021
    %v1089 = vpop.f32.mrf.mxu0
    %v1090 = vadd.f32 0.0, %v1089
    %v1091 = vpop.f32.mrf.mxu0
    %1092 = vdwg.mxu0
    %v1093 = vsel %vm1020, %v992, 0
    %1095 = vmatprep.subr.mxu0 0.0
    %1096 = vmatpush1.msra.mxu0 0.0
    %1097 = vmatprep.subr.mxu0 0.0
    %1098 = vmatpush1.msra.mxu0 0.0
    %1099 = vmatprep.subr.mxu0 0.0
    %1100 = vmatpush1.msra.mxu0 0.0
    %1101 = vmatprep.subr.mxu0 0.0
    %1102 = vmatpush1.msra.mxu0 0.0
    %1103 = vmatprep.subr.mxu0 0.0
    %1104 = vmatpush1.msra.mxu0 0.0
    %1105 = vmatprep.subr.mxu0 0.0
    %1106 = vmatpush1.msra.mxu0 %v1005
    %1107 = vmatprep.subr.mxu0 0.0
    %1108 = vmatpush1.msra.mxu0 %v1004
    %1109 = vmatprep.subr.mxu0 0.0
    %1110 = vmatpush1.msra.mxu0 %v1003
    %1111 = vmatprep.subr.mxu0 0.0
    %1112 = vmatpush1.msra.mxu0 %v1002
    %1113 = vmatprep.subr.mxu0 0.0
    %1114 = vmatpush1.msra.mxu0 %v1001
    %1115 = vmatprep.subr.mxu0 0.0
    %1116 = vmatpush1.msra.mxu0 %v1000
    %1117 = vmatprep.subr.mxu0 0.0
    %1118 = vmatpush1.msra.mxu0 %v999
    %1119 = vmatprep.subr.mxu0 0.0
    %1120 = vmatpush1.msra.mxu0 %v998
    %1121 = vmatprep.subr.mxu0 0.0
    %1122 = vmatpush1.msra.mxu0 %v997
    %1123 = vmatprep.subr.mxu0 0.0
    %1124 = vmatpush1.msra.mxu0 %v996
    %1125 = vmatprep.subr.mxu0 0.0
    %1126 = vmatpush1.msra.mxu0 %v995
    %1127 = vmatprep.subr.mxu0 0.0
    %1128 = vmatpush2.msra.mxu0 0.0
    %1129 = vmatprep.subr.mxu0 0.0
    %1130 = vmatpush2.msra.mxu0 0.0
    %1131 = vmatprep.subr.mxu0 0.0
    %1132 = vmatpush2.msra.mxu0 0.0
    %1133 = vmatprep.subr.mxu0 0.0
    %1134 = vmatpush2.msra.mxu0 0.0
    %1135 = vmatprep.subr.mxu0 0.0
    %1136 = vmatpush2.msra.mxu0 0.0
    %1137 = vmatprep.subr.mxu0 0.0
    %1138 = vmatpush2.msra.mxu0 0.0
    %1139 = vmatprep.subr.mxu0 0.0
    %1140 = vmatpush2.msra.mxu0 0.0
    %1141 = vmatprep.subr.mxu0 0.0
    %1142 = vmatpush2.msra.mxu0 0.0
    %1143 = vmatprep.subr.mxu0 0.0
    %1144 = vmatpush2.msra.mxu0 0.0
    %1145 = vmatprep.subr.mxu0 0.0
    %1146 = vmatpush2.msra.mxu0 0.0
    %1147 = vmatprep.subr.mxu0 0.0
    %1148 = vmatpush2.msra.mxu0 0.0
    %1149 = vmatprep.subr.mxu0 0.0
    %1150 = vmatpush2.msra.mxu0 0.0
    %1151 = vmatprep.subr.mxu0 0.0
    %1152 = vmatpush2.msra.mxu0 0.0
    %1153 = vmatprep.subr.mxu0 0.0
    %1154 = vmatpush2.msra.mxu0 0.0
    %1155 = vmatprep.subr.mxu0 0.0
    %1156 = vmatpush2.msra.mxu0 0.0
    %1157 = vmatprep.subr.mxu0 0.0
    %1158 = vmatpush2.msra.mxu0 0.0
    %1159 = vmatprep.mubr.f32.mxu0 0.0
    %1160 = vmatmul.mubr.f32.gmra.mxu0 %v1093
    %v1161 = vpop.f32.mrf.mxu0
    %v1162 = vadd.f32 %v1090, %v1161
    %v1163 = vpop.f32.mrf.mxu0
    %1164 = vdwg.mxu0
    %s1165 = scalar_lea.vmem %s6, 176
    %v1166 = vld [vmem:[%s1165] sm:$0xff]
    %v1167 = vld [vmem:[%s1165 + $0x8] sm:$0xff]
    %v1168 = vld [vmem:[%s1165 + $0x10] sm:$0xff]
    %v1169 = vld [vmem:[%s1165 + $0x18] sm:$0xff]
    %v1170 = vld [vmem:[%s1165 + $0x20] sm:$0xff]
    %v1171 = vld [vmem:[%s1165 + $0x28] sm:$0xff]
    %v1172 = vld [vmem:[%s1165 + $0x30] sm:$0xff]
    %v1173 = vld [vmem:[%s1165 + $0x38] sm:$0xff]
    %v1174 = vld [vmem:[%s1165 + $0x40] sm:$0xff]
    %v1175 = vld [vmem:[%s1165 + $0x48] sm:$0xff]
    %v1176 = vld [vmem:[%s1165 + $0x50] sm:$0xff]
    %v1177 = vrot.slane %v992, 4
    %v1178 = vsel %vm1020, %v1177, 0
    %1180 = vmatprep.subr.mxu0 0.0
    %1181 = vmatpush1.msra.mxu0 0.0
    %1182 = vmatprep.subr.mxu0 0.0
    %1183 = vmatpush1.msra.mxu0 0.0
    %1184 = vmatprep.subr.mxu0 0.0
    %1185 = vmatpush1.msra.mxu0 0.0
    %1186 = vmatprep.subr.mxu0 0.0
    %1187 = vmatpush1.msra.mxu0 0.0
    %1188 = vmatprep.subr.mxu0 0.0
    %1189 = vmatpush1.msra.mxu0 0.0
    %1190 = vmatprep.subr.mxu0 0.0
    %1191 = vmatpush1.msra.mxu0 %v1176
    %1192 = vmatprep.subr.mxu0 0.0
    %1193 = vmatpush1.msra.mxu0 %v1175
    %1194 = vmatprep.subr.mxu0 0.0
    %1195 = vmatpush1.msra.mxu0 %v1174
    %1196 = vmatprep.subr.mxu0 0.0
    %1197 = vmatpush1.msra.mxu0 %v1173
    %1198 = vmatprep.subr.mxu0 0.0
    %1199 = vmatpush1.msra.mxu0 %v1172
    %1200 = vmatprep.subr.mxu0 0.0
    %1201 = vmatpush1.msra.mxu0 %v1171
    %1202 = vmatprep.subr.mxu0 0.0
    %1203 = vmatpush1.msra.mxu0 %v1170
    %1204 = vmatprep.subr.mxu0 0.0
    %1205 = vmatpush1.msra.mxu0 %v1169
    %1206 = vmatprep.subr.mxu0 0.0
    %1207 = vmatpush1.msra.mxu0 %v1168
    %1208 = vmatprep.subr.mxu0 0.0
    %1209 = vmatpush1.msra.mxu0 %v1167
    %1210 = vmatprep.subr.mxu0 0.0
    %1211 = vmatpush1.msra.mxu0 %v1166
    %1212 = vmatprep.subr.mxu0 0.0
    %1213 = vmatpush2.msra.mxu0 0.0
    %1214 = vmatprep.subr.mxu0 0.0
    %1215 = vmatpush2.msra.mxu0 0.0
    %1216 = vmatprep.subr.mxu0 0.0
    %1217 = vmatpush2.msra.mxu0 0.0
    %1218 = vmatprep.subr.mxu0 0.0
    %1219 = vmatpush2.msra.mxu0 0.0
    %1220 = vmatprep.subr.mxu0 0.0
    %1221 = vmatpush2.msra.mxu0 0.0
    %1222 = vmatprep.subr.mxu0 0.0
    %1223 = vmatpush2.msra.mxu0 0.0
    %1224 = vmatprep.subr.mxu0 0.0
    %1225 = vmatpush2.msra.mxu0 0.0
    %1226 = vmatprep.subr.mxu0 0.0
    %1227 = vmatpush2.msra.mxu0 0.0
    %1228 = vmatprep.subr.mxu0 0.0
    %1229 = vmatpush2.msra.mxu0 0.0
    %1230 = vmatprep.subr.mxu0 0.0
    %1231 = vmatpush2.msra.mxu0 0.0
    %1232 = vmatprep.subr.mxu0 0.0
    %1233 = vmatpush2.msra.mxu0 0.0
    %1234 = vmatprep.subr.mxu0 0.0
    %1235 = vmatpush2.msra.mxu0 0.0
    %1236 = vmatprep.subr.mxu0 0.0
    %1237 = vmatpush2.msra.mxu0 0.0
    %1238 = vmatprep.subr.mxu0 0.0
    %1239 = vmatpush2.msra.mxu0 0.0
    %1240 = vmatprep.subr.mxu0 0.0
    %1241 = vmatpush2.msra.mxu0 0.0
    %1242 = vmatprep.subr.mxu0 0.0
    %1243 = vmatpush2.msra.mxu0 0.0
    %1244 = vmatprep.mubr.f32.mxu0 0.0
    %1245 = vmatmul.mubr.f32.gmra.mxu0 %v1178
    %v1246 = vpop.f32.mrf.mxu0
    %v1247 = vadd.f32 0.0, %v1246
    %v1248 = vpop.f32.mrf.mxu0
    %1249 = vdwg.mxu0
    %v1250 = vadd.f32 %v1162, %v1247
    %s1251 = scalar_lea.vmem %s6, 264
    %v1252 = vld [vmem:[%s1251] sm:$0xff]
    %v1253 = vld [vmem:[%s1251 + $0x8] sm:$0xff]
    %v1254 = vld [vmem:[%s1251 + $0x10] sm:$0xff]
    %v1255 = vld [vmem:[%s1251 + $0x18] sm:$0xff]
    %v1256 = vld [vmem:[%s1251 + $0x20] sm:$0xff]
    %v1257 = vld [vmem:[%s1251 + $0x28] sm:$0xff]
    %v1258 = vld [vmem:[%s1251 + $0x30] sm:$0xff]
    %v1259 = vld [vmem:[%s1251 + $0x38] sm:$0xff]
    %v1260 = vld [vmem:[%s1251 + $0x40] sm:$0xff]
    %v1261 = vld [vmem:[%s1251 + $0x48] sm:$0xff]
    %v1262 = vld [vmem:[%s1251 + $0x50] sm:$0xff]
    %v1263 = vrot.slane %v992, 6
    %v1264 = vsel %vm1020, %v1263, 0
    %1266 = vmatprep.subr.mxu0 0.0
    %1267 = vmatpush1.msra.mxu0 0.0
    %1268 = vmatprep.subr.mxu0 0.0
    %1269 = vmatpush1.msra.mxu0 0.0
    %1270 = vmatprep.subr.mxu0 0.0
    %1271 = vmatpush1.msra.mxu0 0.0
    %1272 = vmatprep.subr.mxu0 0.0
    %1273 = vmatpush1.msra.mxu0 0.0
    %1274 = vmatprep.subr.mxu0 0.0
    %1275 = vmatpush1.msra.mxu0 0.0
    %1276 = vmatprep.subr.mxu0 0.0
    %1277 = vmatpush1.msra.mxu0 %v1262
    %1278 = vmatprep.subr.mxu0 0.0
    %1279 = vmatpush1.msra.mxu0 %v1261
    %1280 = vmatprep.subr.mxu0 0.0
    %1281 = vmatpush1.msra.mxu0 %v1260
    %1282 = vmatprep.subr.mxu0 0.0
    %1283 = vmatpush1.msra.mxu0 %v1259
    %1284 = vmatprep.subr.mxu0 0.0
    %1285 = vmatpush1.msra.mxu0 %v1258
    %1286 = vmatprep.subr.mxu0 0.0
    %1287 = vmatpush1.msra.mxu0 %v1257
    %1288 = vmatprep.subr.mxu0 0.0
    %1289 = vmatpush1.msra.mxu0 %v1256
    %1290 = vmatprep.subr.mxu0 0.0
    %1291 = vmatpush1.msra.mxu0 %v1255
    %1292 = vmatprep.subr.mxu0 0.0
    %1293 = vmatpush1.msra.mxu0 %v1254
    %1294 = vmatprep.subr.mxu0 0.0
    %1295 = vmatpush1.msra.mxu0 %v1253
    %1296 = vmatprep.subr.mxu0 0.0
    %1297 = vmatpush1.msra.mxu0 %v1252
    %1298 = vmatprep.subr.mxu0 0.0
    %1299 = vmatpush2.msra.mxu0 0.0
    %1300 = vmatprep.subr.mxu0 0.0
    %1301 = vmatpush2.msra.mxu0 0.0
    %1302 = vmatprep.subr.mxu0 0.0
    %1303 = vmatpush2.msra.mxu0 0.0
    %1304 = vmatprep.subr.mxu0 0.0
    %1305 = vmatpush2.msra.mxu0 0.0
    %1306 = vmatprep.subr.mxu0 0.0
    %1307 = vmatpush2.msra.mxu0 0.0
    %1308 = vmatprep.subr.mxu0 0.0
    %1309 = vmatpush2.msra.mxu0 0.0
    %1310 = vmatprep.subr.mxu0 0.0
    %1311 = vmatpush2.msra.mxu0 0.0
    %1312 = vmatprep.subr.mxu0 0.0
    %1313 = vmatpush2.msra.mxu0 0.0
    %1314 = vmatprep.subr.mxu0 0.0
    %1315 = vmatpush2.msra.mxu0 0.0
    %1316 = vmatprep.subr.mxu0 0.0
    %1317 = vmatpush2.msra.mxu0 0.0
    %1318 = vmatprep.subr.mxu0 0.0
    %1319 = vmatpush2.msra.mxu0 0.0
    %1320 = vmatprep.subr.mxu0 0.0
    %1321 = vmatpush2.msra.mxu0 0.0
    %1322 = vmatprep.subr.mxu0 0.0
    %1323 = vmatpush2.msra.mxu0 0.0
    %1324 = vmatprep.subr.mxu0 0.0
    %1325 = vmatpush2.msra.mxu0 0.0
    %1326 = vmatprep.subr.mxu0 0.0
    %1327 = vmatpush2.msra.mxu0 0.0
    %1328 = vmatprep.subr.mxu0 0.0
    %1329 = vmatpush2.msra.mxu0 0.0
    %1330 = vmatprep.mubr.f32.mxu0 0.0
    %1331 = vmatmul.mubr.f32.gmra.mxu0 %v1264
    %v1332 = vpop.f32.mrf.mxu0
    %v1333 = vadd.f32 0.0, %v1332
    %v1334 = vpop.f32.mrf.mxu0
    %1335 = vdwg.mxu0
    %v1336 = vadd.f32 %v1250, %v1333
    %s1337 = scalar_lea.vmem %s6, 352
    %v1338 = vld [vmem:[%s1337] sm:$0xff]
    %v1339 = vld [vmem:[%s1337 + $0x8] sm:$0xff]
    %v1340 = vld [vmem:[%s1337 + $0x10] sm:$0xff]
    %v1341 = vld [vmem:[%s1337 + $0x18] sm:$0xff]
    %v1342 = vld [vmem:[%s1337 + $0x20] sm:$0xff]
    %v1343 = vld [vmem:[%s1337 + $0x28] sm:$0xff]
    %v1344 = vld [vmem:[%s1337 + $0x30] sm:$0xff]
    %v1345 = vld [vmem:[%s1337 + $0x38] sm:$0xff]
    %v1346 = vld [vmem:[%s1337 + $0x40] sm:$0xff]
    %v1347 = vld [vmem:[%s1337 + $0x48] sm:$0xff]
    %v1348 = vld [vmem:[%s1337 + $0x50] sm:$0xff]
    %v1350 = vsel %vm1020, %v993, 0
    %1352 = vmatprep.subr.mxu0 0.0
    %1353 = vmatpush1.msra.mxu0 0.0
    %1354 = vmatprep.subr.mxu0 0.0
    %1355 = vmatpush1.msra.mxu0 0.0
    %1356 = vmatprep.subr.mxu0 0.0
    %1357 = vmatpush1.msra.mxu0 0.0
    %1358 = vmatprep.subr.mxu0 0.0
    %1359 = vmatpush1.msra.mxu0 0.0
    %1360 = vmatprep.subr.mxu0 0.0
    %1361 = vmatpush1.msra.mxu0 0.0
    %1362 = vmatprep.subr.mxu0 0.0
    %1363 = vmatpush1.msra.mxu0 %v1348
    %1364 = vmatprep.subr.mxu0 0.0
    %1365 = vmatpush1.msra.mxu0 %v1347
    %1366 = vmatprep.subr.mxu0 0.0
    %1367 = vmatpush1.msra.mxu0 %v1346
    %1368 = vmatprep.subr.mxu0 0.0
    %1369 = vmatpush1.msra.mxu0 %v1345
    %1370 = vmatprep.subr.mxu0 0.0
    %1371 = vmatpush1.msra.mxu0 %v1344
    %1372 = vmatprep.subr.mxu0 0.0
    %1373 = vmatpush1.msra.mxu0 %v1343
    %1374 = vmatprep.subr.mxu0 0.0
    %1375 = vmatpush1.msra.mxu0 %v1342
    %1376 = vmatprep.subr.mxu0 0.0
    %1377 = vmatpush1.msra.mxu0 %v1341
    %1378 = vmatprep.subr.mxu0 0.0
    %1379 = vmatpush1.msra.mxu0 %v1340
    %1380 = vmatprep.subr.mxu0 0.0
    %1381 = vmatpush1.msra.mxu0 %v1339
    %1382 = vmatprep.subr.mxu0 0.0
    %1383 = vmatpush1.msra.mxu0 %v1338
    %1384 = vmatprep.subr.mxu0 0.0
    %1385 = vmatpush2.msra.mxu0 0.0
    %1386 = vmatprep.subr.mxu0 0.0
    %1387 = vmatpush2.msra.mxu0 0.0
    %1388 = vmatprep.subr.mxu0 0.0
    %1389 = vmatpush2.msra.mxu0 0.0
    %1390 = vmatprep.subr.mxu0 0.0
    %1391 = vmatpush2.msra.mxu0 0.0
    %1392 = vmatprep.subr.mxu0 0.0
    %1393 = vmatpush2.msra.mxu0 0.0
    %1394 = vmatprep.subr.mxu0 0.0
    %1395 = vmatpush2.msra.mxu0 0.0
    %1396 = vmatprep.subr.mxu0 0.0
    %1397 = vmatpush2.msra.mxu0 0.0
    %1398 = vmatprep.subr.mxu0 0.0
    %1399 = vmatpush2.msra.mxu0 0.0
    %1400 = vmatprep.subr.mxu0 0.0
    %1401 = vmatpush2.msra.mxu0 0.0
    %1402 = vmatprep.subr.mxu0 0.0
    %1403 = vmatpush2.msra.mxu0 0.0
    %1404 = vmatprep.subr.mxu0 0.0
    %1405 = vmatpush2.msra.mxu0 0.0
    %1406 = vmatprep.subr.mxu0 0.0
    %1407 = vmatpush2.msra.mxu0 0.0
    %1408 = vmatprep.subr.mxu0 0.0
    %1409 = vmatpush2.msra.mxu0 0.0
    %1410 = vmatprep.subr.mxu0 0.0
    %1411 = vmatpush2.msra.mxu0 0.0
    %1412 = vmatprep.subr.mxu0 0.0
    %1413 = vmatpush2.msra.mxu0 0.0
    %1414 = vmatprep.subr.mxu0 0.0
    %1415 = vmatpush2.msra.mxu0 0.0
    %1416 = vmatprep.mubr.f32.mxu0 0.0
    %1417 = vmatmul.mubr.f32.gmra.mxu0 %v1350
    %v1418 = vpop.f32.mrf.mxu0
    %v1419 = vadd.f32 0.0, %v1418
    %v1420 = vpop.f32.mrf.mxu0
    %1421 = vdwg.mxu0
    %v1422 = vadd.f32 %v1336, %v1419
    %s1423 = scalar_lea.vmem %s6, 440
    %v1424 = vld [vmem:[%s1423] sm:$0xff]
    %v1425 = vld [vmem:[%s1423 + $0x8] sm:$0xff]
    %v1426 = vld [vmem:[%s1423 + $0x10] sm:$0xff]
    %v1427 = vld [vmem:[%s1423 + $0x18] sm:$0xff]
    %v1428 = vld [vmem:[%s1423 + $0x20] sm:$0xff]
    %v1429 = vld [vmem:[%s1423 + $0x28] sm:$0xff]
    %v1430 = vld [vmem:[%s1423 + $0x30] sm:$0xff]
    %v1431 = vld [vmem:[%s1423 + $0x38] sm:$0xff]
    %v1432 = vld [vmem:[%s1423 + $0x40] sm:$0xff]
    %v1433 = vld [vmem:[%s1423 + $0x48] sm:$0xff]
    %v1434 = vld [vmem:[%s1423 + $0x50] sm:$0xff]
    %v1435 = vrot.slane %v993, 2
    %v1436 = vsel %vm1020, %v1435, 0
    %1438 = vmatprep.subr.mxu0 0.0
    %1439 = vmatpush1.msra.mxu0 0.0
    %1440 = vmatprep.subr.mxu0 0.0
    %1441 = vmatpush1.msra.mxu0 0.0
    %1442 = vmatprep.subr.mxu0 0.0
    %1443 = vmatpush1.msra.mxu0 0.0
    %1444 = vmatprep.subr.mxu0 0.0
    %1445 = vmatpush1.msra.mxu0 0.0
    %1446 = vmatprep.subr.mxu0 0.0
    %1447 = vmatpush1.msra.mxu0 0.0
    %1448 = vmatprep.subr.mxu0 0.0
    %1449 = vmatpush1.msra.mxu0 %v1434
    %1450 = vmatprep.subr.mxu0 0.0
    %1451 = vmatpush1.msra.mxu0 %v1433
    %1452 = vmatprep.subr.mxu0 0.0
    %1453 = vmatpush1.msra.mxu0 %v1432
    %1454 = vmatprep.subr.mxu0 0.0
    %1455 = vmatpush1.msra.mxu0 %v1431
    %1456 = vmatprep.subr.mxu0 0.0
    %1457 = vmatpush1.msra.mxu0 %v1430
    %1458 = vmatprep.subr.mxu0 0.0
    %1459 = vmatpush1.msra.mxu0 %v1429
    %1460 = vmatprep.subr.mxu0 0.0
    %1461 = vmatpush1.msra.mxu0 %v1428
    %1462 = vmatprep.subr.mxu0 0.0
    %1463 = vmatpush1.msra.mxu0 %v1427
    %1464 = vmatprep.subr.mxu0 0.0
    %1465 = vmatpush1.msra.mxu0 %v1426
    %1466 = vmatprep.subr.mxu0 0.0
    %1467 = vmatpush1.msra.mxu0 %v1425
    %1468 = vmatprep.subr.mxu0 0.0
    %1469 = vmatpush1.msra.mxu0 %v1424
    %1470 = vmatprep.subr.mxu0 0.0
    %1471 = vmatpush2.msra.mxu0 0.0
    %1472 = vmatprep.subr.mxu0 0.0
    %1473 = vmatpush2.msra.mxu0 0.0
    %1474 = vmatprep.subr.mxu0 0.0
    %1475 = vmatpush2.msra.mxu0 0.0
    %1476 = vmatprep.subr.mxu0 0.0
    %1477 = vmatpush2.msra.mxu0 0.0
    %1478 = vmatprep.subr.mxu0 0.0
    %1479 = vmatpush2.msra.mxu0 0.0
    %1480 = vmatprep.subr.mxu0 0.0
    %1481 = vmatpush2.msra.mxu0 0.0
    %1482 = vmatprep.subr.mxu0 0.0
    %1483 = vmatpush2.msra.mxu0 0.0
    %1484 = vmatprep.subr.mxu0 0.0
    %1485 = vmatpush2.msra.mxu0 0.0
    %1486 = vmatprep.subr.mxu0 0.0
    %1487 = vmatpush2.msra.mxu0 0.0
    %1488 = vmatprep.subr.mxu0 0.0
    %1489 = vmatpush2.msra.mxu0 0.0
    %1490 = vmatprep.subr.mxu0 0.0
    %1491 = vmatpush2.msra.mxu0 0.0
    %1492 = vmatprep.subr.mxu0 0.0
    %1493 = vmatpush2.msra.mxu0 0.0
    %1494 = vmatprep.subr.mxu0 0.0
    %1495 = vmatpush2.msra.mxu0 0.0
    %1496 = vmatprep.subr.mxu0 0.0
    %1497 = vmatpush2.msra.mxu0 0.0
    %1498 = vmatprep.subr.mxu0 0.0
    %1499 = vmatpush2.msra.mxu0 0.0
    %1500 = vmatprep.subr.mxu0 0.0
    %1501 = vmatpush2.msra.mxu0 0.0
    %1502 = vmatprep.mubr.f32.mxu0 0.0
    %1503 = vmatmul.mubr.f32.gmra.mxu0 %v1436
    %v1504 = vpop.f32.mrf.mxu0
    %v1505 = vadd.f32 0.0, %v1504
    %v1506 = vpop.f32.mrf.mxu0
    %1507 = vdwg.mxu0
    %v1508 = vadd.f32 %v1422, %v1505
    %s1509 = scalar_lea.vmem %s6, 528
    %v1510 = vld [vmem:[%s1509] sm:$0xff]
    %v1511 = vld [vmem:[%s1509 + $0x8] sm:$0xff]
    %v1512 = vld [vmem:[%s1509 + $0x10] sm:$0xff]
    %v1513 = vld [vmem:[%s1509 + $0x18] sm:$0xff]
    %v1514 = vld [vmem:[%s1509 + $0x20] sm:$0xff]
    %v1515 = vld [vmem:[%s1509 + $0x28] sm:$0xff]
    %v1516 = vld [vmem:[%s1509 + $0x30] sm:$0xff]
    %v1517 = vld [vmem:[%s1509 + $0x38] sm:$0xff]
    %v1518 = vld [vmem:[%s1509 + $0x40] sm:$0xff]
    %v1519 = vld [vmem:[%s1509 + $0x48] sm:$0xff]
    %v1520 = vld [vmem:[%s1509 + $0x50] sm:$0xff]
    %v1521 = vrot.slane %v993, 4
    %v1522 = vsel %vm1020, %v1521, 0
    %1524 = vmatprep.subr.mxu0 0.0
    %1525 = vmatpush1.msra.mxu0 0.0
    %1526 = vmatprep.subr.mxu0 0.0
    %1527 = vmatpush1.msra.mxu0 0.0
    %1528 = vmatprep.subr.mxu0 0.0
    %1529 = vmatpush1.msra.mxu0 0.0
    %1530 = vmatprep.subr.mxu0 0.0
    %1531 = vmatpush1.msra.mxu0 0.0
    %1532 = vmatprep.subr.mxu0 0.0
    %1533 = vmatpush1.msra.mxu0 0.0
    %1534 = vmatprep.subr.mxu0 0.0
    %1535 = vmatpush1.msra.mxu0 %v1520
    %1536 = vmatprep.subr.mxu0 0.0
    %1537 = vmatpush1.msra.mxu0 %v1519
    %1538 = vmatprep.subr.mxu0 0.0
    %1539 = vmatpush1.msra.mxu0 %v1518
    %1540 = vmatprep.subr.mxu0 0.0
    %1541 = vmatpush1.msra.mxu0 %v1517
    %1542 = vmatprep.subr.mxu0 0.0
    %1543 = vmatpush1.msra.mxu0 %v1516
    %1544 = vmatprep.subr.mxu0 0.0
    %1545 = vmatpush1.msra.mxu0 %v1515
    %1546 = vmatprep.subr.mxu0 0.0
    %1547 = vmatpush1.msra.mxu0 %v1514
    %1548 = vmatprep.subr.mxu0 0.0
    %1549 = vmatpush1.msra.mxu0 %v1513
    %1550 = vmatprep.subr.mxu0 0.0
    %1551 = vmatpush1.msra.mxu0 %v1512
    %1552 = vmatprep.subr.mxu0 0.0
    %1553 = vmatpush1.msra.mxu0 %v1511
    %1554 = vmatprep.subr.mxu0 0.0
    %1555 = vmatpush1.msra.mxu0 %v1510
    %1556 = vmatprep.subr.mxu0 0.0
    %1557 = vmatpush2.msra.mxu0 0.0
    %1558 = vmatprep.subr.mxu0 0.0
    %1559 = vmatpush2.msra.mxu0 0.0
    %1560 = vmatprep.subr.mxu0 0.0
    %1561 = vmatpush2.msra.mxu0 0.0
    %1562 = vmatprep.subr.mxu0 0.0
    %1563 = vmatpush2.msra.mxu0 0.0
    %1564 = vmatprep.subr.mxu0 0.0
    %1565 = vmatpush2.msra.mxu0 0.0
    %1566 = vmatprep.subr.mxu0 0.0
    %1567 = vmatpush2.msra.mxu0 0.0
    %1568 = vmatprep.subr.mxu0 0.0
    %1569 = vmatpush2.msra.mxu0 0.0
    %1570 = vmatprep.subr.mxu0 0.0
    %1571 = vmatpush2.msra.mxu0 0.0
    %1572 = vmatprep.subr.mxu0 0.0
    %1573 = vmatpush2.msra.mxu0 0.0
    %1574 = vmatprep.subr.mxu0 0.0
    %1575 = vmatpush2.msra.mxu0 0.0
    %1576 = vmatprep.subr.mxu0 0.0
    %1577 = vmatpush2.msra.mxu0 0.0
    %1578 = vmatprep.subr.mxu0 0.0
    %1579 = vmatpush2.msra.mxu0 0.0
    %1580 = vmatprep.subr.mxu0 0.0
    %1581 = vmatpush2.msra.mxu0 0.0
    %1582 = vmatprep.subr.mxu0 0.0
    %1583 = vmatpush2.msra.mxu0 0.0
    %1584 = vmatprep.subr.mxu0 0.0
    %1585 = vmatpush2.msra.mxu0 0.0
    %1586 = vmatprep.subr.mxu0 0.0
    %1587 = vmatpush2.msra.mxu0 0.0
    %1588 = vmatprep.mubr.f32.mxu0 0.0
    %1589 = vmatmul.mubr.f32.gmra.mxu0 %v1522
    %v1590 = vpop.f32.mrf.mxu0
    %v1591 = vadd.f32 0.0, %v1590
    %v1592 = vpop.f32.mrf.mxu0
    %1593 = vdwg.mxu0
    %v1594 = vadd.f32 %v1508, %v1591
    %s1595 = scalar_lea.vmem %s6, 616
    %v1596 = vld [vmem:[%s1595] sm:$0xff]
    %v1597 = vld [vmem:[%s1595 + $0x8] sm:$0xff]
    %v1598 = vld [vmem:[%s1595 + $0x10] sm:$0xff]
    %v1599 = vld [vmem:[%s1595 + $0x18] sm:$0xff]
    %v1600 = vld [vmem:[%s1595 + $0x20] sm:$0xff]
    %v1601 = vld [vmem:[%s1595 + $0x28] sm:$0xff]
    %v1602 = vld [vmem:[%s1595 + $0x30] sm:$0xff]
    %v1603 = vld [vmem:[%s1595 + $0x38] sm:$0xff]
    %v1604 = vld [vmem:[%s1595 + $0x40] sm:$0xff]
    %v1605 = vld [vmem:[%s1595 + $0x48] sm:$0xff]
    %v1606 = vld [vmem:[%s1595 + $0x50] sm:$0xff]
    %v1607 = vrot.slane %v993, 6
    %v1608 = vsel %vm1020, %v1607, 0
    %1610 = vmatprep.subr.mxu0 0.0
    %1611 = vmatpush1.msra.mxu0 0.0
    %1612 = vmatprep.subr.mxu0 0.0
    %1613 = vmatpush1.msra.mxu0 0.0
    %1614 = vmatprep.subr.mxu0 0.0
    %1615 = vmatpush1.msra.mxu0 0.0
    %1616 = vmatprep.subr.mxu0 0.0
    %1617 = vmatpush1.msra.mxu0 0.0
    %1618 = vmatprep.subr.mxu0 0.0
    %1619 = vmatpush1.msra.mxu0 0.0
    %1620 = vmatprep.subr.mxu0 0.0
    %1621 = vmatpush1.msra.mxu0 %v1606
    %1622 = vmatprep.subr.mxu0 0.0
    %1623 = vmatpush1.msra.mxu0 %v1605
    %1624 = vmatprep.subr.mxu0 0.0
    %1625 = vmatpush1.msra.mxu0 %v1604
    %1626 = vmatprep.subr.mxu0 0.0
    %1627 = vmatpush1.msra.mxu0 %v1603
    %1628 = vmatprep.subr.mxu0 0.0
    %1629 = vmatpush1.msra.mxu0 %v1602
    %1630 = vmatprep.subr.mxu0 0.0
    %1631 = vmatpush1.msra.mxu0 %v1601
    %1632 = vmatprep.subr.mxu0 0.0
    %1633 = vmatpush1.msra.mxu0 %v1600
    %1634 = vmatprep.subr.mxu0 0.0
    %1635 = vmatpush1.msra.mxu0 %v1599
    %1636 = vmatprep.subr.mxu0 0.0
    %1637 = vmatpush1.msra.mxu0 %v1598
    %1638 = vmatprep.subr.mxu0 0.0
    %1639 = vmatpush1.msra.mxu0 %v1597
    %1640 = vmatprep.subr.mxu0 0.0
    %1641 = vmatpush1.msra.mxu0 %v1596
    %1642 = vmatprep.subr.mxu0 0.0
    %1643 = vmatpush2.msra.mxu0 0.0
    %1644 = vmatprep.subr.mxu0 0.0
    %1645 = vmatpush2.msra.mxu0 0.0
    %1646 = vmatprep.subr.mxu0 0.0
    %1647 = vmatpush2.msra.mxu0 0.0
    %1648 = vmatprep.subr.mxu0 0.0
    %1649 = vmatpush2.msra.mxu0 0.0
    %1650 = vmatprep.subr.mxu0 0.0
    %1651 = vmatpush2.msra.mxu0 0.0
    %1652 = vmatprep.subr.mxu0 0.0
    %1653 = vmatpush2.msra.mxu0 0.0
    %1654 = vmatprep.subr.mxu0 0.0
    %1655 = vmatpush2.msra.mxu0 0.0
    %1656 = vmatprep.subr.mxu0 0.0
    %1657 = vmatpush2.msra.mxu0 0.0
    %1658 = vmatprep.subr.mxu0 0.0
    %1659 = vmatpush2.msra.mxu0 0.0
    %1660 = vmatprep.subr.mxu0 0.0
    %1661 = vmatpush2.msra.mxu0 0.0
    %1662 = vmatprep.subr.mxu0 0.0
    %1663 = vmatpush2.msra.mxu0 0.0
    %1664 = vmatprep.subr.mxu0 0.0
    %1665 = vmatpush2.msra.mxu0 0.0
    %1666 = vmatprep.subr.mxu0 0.0
    %1667 = vmatpush2.msra.mxu0 0.0
    %1668 = vmatprep.subr.mxu0 0.0
    %1669 = vmatpush2.msra.mxu0 0.0
    %1670 = vmatprep.subr.mxu0 0.0
    %1671 = vmatpush2.msra.mxu0 0.0
    %1672 = vmatprep.subr.mxu0 0.0
    %1673 = vmatpush2.msra.mxu0 0.0
    %1674 = vmatprep.mubr.f32.mxu0 0.0
    %1675 = vmatmul.mubr.f32.gmra.mxu0 %v1608
    %v1676 = vpop.f32.mrf.mxu0
    %v1677 = vadd.f32 0.0, %v1676
    %v1678 = vpop.f32.mrf.mxu0
    %1679 = vdwg.mxu0
    %v1680 = vadd.f32 %v1594, %v1677
    %s1681 = scalar_lea.vmem %s6, 704
    %v1682 = vld [vmem:[%s1681] sm:$0xff]
    %v1683 = vld [vmem:[%s1681 + $0x8] sm:$0xff]
    %v1684 = vld [vmem:[%s1681 + $0x10] sm:$0xff]
    %v1685 = vld [vmem:[%s1681 + $0x18] sm:$0xff]
    %v1686 = vld [vmem:[%s1681 + $0x20] sm:$0xff]
    %v1687 = vld [vmem:[%s1681 + $0x28] sm:$0xff]
    %v1688 = vld [vmem:[%s1681 + $0x30] sm:$0xff]
    %v1689 = vld [vmem:[%s1681 + $0x38] sm:$0xff]
    %v1690 = vld [vmem:[%s1681 + $0x40] sm:$0xff]
    %v1691 = vld [vmem:[%s1681 + $0x48] sm:$0xff]
    %v1692 = vld [vmem:[%s1681 + $0x50] sm:$0xff]
    %v1694 = vsel %vm1020, %v994, 0
    %1696 = vmatprep.subr.mxu0 0.0
    %1697 = vmatpush1.msra.mxu0 0.0
    %1698 = vmatprep.subr.mxu0 0.0
    %1699 = vmatpush1.msra.mxu0 0.0
    %1700 = vmatprep.subr.mxu0 0.0
    %1701 = vmatpush1.msra.mxu0 0.0
    %1702 = vmatprep.subr.mxu0 0.0
    %1703 = vmatpush1.msra.mxu0 0.0
    %1704 = vmatprep.subr.mxu0 0.0
    %1705 = vmatpush1.msra.mxu0 0.0
    %1706 = vmatprep.subr.mxu0 0.0
    %1707 = vmatpush1.msra.mxu0 %v1692
    %1708 = vmatprep.subr.mxu0 0.0
    %1709 = vmatpush1.msra.mxu0 %v1691
    %1710 = vmatprep.subr.mxu0 0.0
    %1711 = vmatpush1.msra.mxu0 %v1690
    %1712 = vmatprep.subr.mxu0 0.0
    %1713 = vmatpush1.msra.mxu0 %v1689
    %1714 = vmatprep.subr.mxu0 0.0
    %1715 = vmatpush1.msra.mxu0 %v1688
    %1716 = vmatprep.subr.mxu0 0.0
    %1717 = vmatpush1.msra.mxu0 %v1687
    %1718 = vmatprep.subr.mxu0 0.0
    %1719 = vmatpush1.msra.mxu0 %v1686
    %1720 = vmatprep.subr.mxu0 0.0
    %1721 = vmatpush1.msra.mxu0 %v1685
    %1722 = vmatprep.subr.mxu0 0.0
    %1723 = vmatpush1.msra.mxu0 %v1684
    %1724 = vmatprep.subr.mxu0 0.0
    %1725 = vmatpush1.msra.mxu0 %v1683
    %1726 = vmatprep.subr.mxu0 0.0
    %1727 = vmatpush1.msra.mxu0 %v1682
    %1728 = vmatprep.subr.mxu0 0.0
    %1729 = vmatpush2.msra.mxu0 0.0
    %1730 = vmatprep.subr.mxu0 0.0
    %1731 = vmatpush2.msra.mxu0 0.0
    %1732 = vmatprep.subr.mxu0 0.0
    %1733 = vmatpush2.msra.mxu0 0.0
    %1734 = vmatprep.subr.mxu0 0.0
    %1735 = vmatpush2.msra.mxu0 0.0
    %1736 = vmatprep.subr.mxu0 0.0
    %1737 = vmatpush2.msra.mxu0 0.0
    %1738 = vmatprep.subr.mxu0 0.0
    %1739 = vmatpush2.msra.mxu0 0.0
    %1740 = vmatprep.subr.mxu0 0.0
    %1741 = vmatpush2.msra.mxu0 0.0
    %1742 = vmatprep.subr.mxu0 0.0
    %1743 = vmatpush2.msra.mxu0 0.0
    %1744 = vmatprep.subr.mxu0 0.0
    %1745 = vmatpush2.msra.mxu0 0.0
    %1746 = vmatprep.subr.mxu0 0.0
    %1747 = vmatpush2.msra.mxu0 0.0
    %1748 = vmatprep.subr.mxu0 0.0
    %1749 = vmatpush2.msra.mxu0 0.0
    %1750 = vmatprep.subr.mxu0 0.0
    %1751 = vmatpush2.msra.mxu0 0.0
    %1752 = vmatprep.subr.mxu0 0.0
    %1753 = vmatpush2.msra.mxu0 0.0
    %1754 = vmatprep.subr.mxu0 0.0
    %1755 = vmatpush2.msra.mxu0 0.0
    %1756 = vmatprep.subr.mxu0 0.0
    %1757 = vmatpush2.msra.mxu0 0.0
    %1758 = vmatprep.subr.mxu0 0.0
    %1759 = vmatpush2.msra.mxu0 0.0
    %1760 = vmatprep.mubr.f32.mxu0 0.0
    %1761 = vmatmul.mubr.f32.gmra.mxu0 %v1694
    %v1762 = vpop.f32.mrf.mxu0
    %v1763 = vadd.f32 0.0, %v1762
    %v1764 = vpop.f32.mrf.mxu0
    %1765 = vdwg.mxu0
    %v1766 = vadd.f32 %v1680, %v1763
    %s1767 = scalar_lea.vmem %s6, 792
    %v1768 = vld [vmem:[%s1767] sm:$0xff]
    %v1769 = vld [vmem:[%s1767 + $0x8] sm:$0xff]
    %v1770 = vld [vmem:[%s1767 + $0x10] sm:$0xff]
    %v1771 = vld [vmem:[%s1767 + $0x18] sm:$0xff]
    %v1772 = vld [vmem:[%s1767 + $0x20] sm:$0xff]
    %v1773 = vld [vmem:[%s1767 + $0x28] sm:$0xff]
    %v1774 = vld [vmem:[%s1767 + $0x30] sm:$0xff]
    %v1775 = vld [vmem:[%s1767 + $0x38] sm:$0xff]
    %v1776 = vld [vmem:[%s1767 + $0x40] sm:$0xff]
    %v1777 = vld [vmem:[%s1767 + $0x48] sm:$0xff]
    %v1778 = vld [vmem:[%s1767 + $0x50] sm:$0xff]
    %v1779 = vrot.slane %v994, 2
    %v1780 = vsel %vm1020, %v1779, 0
    %1782 = vmatprep.subr.mxu0 0.0
    %1783 = vmatpush1.msra.mxu0 0.0
    %1784 = vmatprep.subr.mxu0 0.0
    %1785 = vmatpush1.msra.mxu0 0.0
    %1786 = vmatprep.subr.mxu0 0.0
    %1787 = vmatpush1.msra.mxu0 0.0
    %1788 = vmatprep.subr.mxu0 0.0
    %1789 = vmatpush1.msra.mxu0 0.0
    %1790 = vmatprep.subr.mxu0 0.0
    %1791 = vmatpush1.msra.mxu0 0.0
    %1792 = vmatprep.subr.mxu0 0.0
    %1793 = vmatpush1.msra.mxu0 %v1778
    %1794 = vmatprep.subr.mxu0 0.0
    %1795 = vmatpush1.msra.mxu0 %v1777
    %1796 = vmatprep.subr.mxu0 0.0
    %1797 = vmatpush1.msra.mxu0 %v1776
    %1798 = vmatprep.subr.mxu0 0.0
    %1799 = vmatpush1.msra.mxu0 %v1775
    %1800 = vmatprep.subr.mxu0 0.0
    %1801 = vmatpush1.msra.mxu0 %v1774
    %1802 = vmatprep.subr.mxu0 0.0
    %1803 = vmatpush1.msra.mxu0 %v1773
    %1804 = vmatprep.subr.mxu0 0.0
    %1805 = vmatpush1.msra.mxu0 %v1772
    %1806 = vmatprep.subr.mxu0 0.0
    %1807 = vmatpush1.msra.mxu0 %v1771
    %1808 = vmatprep.subr.mxu0 0.0
    %1809 = vmatpush1.msra.mxu0 %v1770
    %1810 = vmatprep.subr.mxu0 0.0
    %1811 = vmatpush1.msra.mxu0 %v1769
    %1812 = vmatprep.subr.mxu0 0.0
    %1813 = vmatpush1.msra.mxu0 %v1768
    %1814 = vmatprep.subr.mxu0 0.0
    %1815 = vmatpush2.msra.mxu0 0.0
    %1816 = vmatprep.subr.mxu0 0.0
    %1817 = vmatpush2.msra.mxu0 0.0
    %1818 = vmatprep.subr.mxu0 0.0
    %1819 = vmatpush2.msra.mxu0 0.0
    %1820 = vmatprep.subr.mxu0 0.0
    %1821 = vmatpush2.msra.mxu0 0.0
    %1822 = vmatprep.subr.mxu0 0.0
    %1823 = vmatpush2.msra.mxu0 0.0
    %1824 = vmatprep.subr.mxu0 0.0
    %1825 = vmatpush2.msra.mxu0 0.0
    %1826 = vmatprep.subr.mxu0 0.0
    %1827 = vmatpush2.msra.mxu0 0.0
    %1828 = vmatprep.subr.mxu0 0.0
    %1829 = vmatpush2.msra.mxu0 0.0
    %1830 = vmatprep.subr.mxu0 0.0
    %1831 = vmatpush2.msra.mxu0 0.0
    %1832 = vmatprep.subr.mxu0 0.0
    %1833 = vmatpush2.msra.mxu0 0.0
    %1834 = vmatprep.subr.mxu0 0.0
    %1835 = vmatpush2.msra.mxu0 0.0
    %1836 = vmatprep.subr.mxu0 0.0
    %1837 = vmatpush2.msra.mxu0 0.0
    %1838 = vmatprep.subr.mxu0 0.0
    %1839 = vmatpush2.msra.mxu0 0.0
    %1840 = vmatprep.subr.mxu0 0.0
    %1841 = vmatpush2.msra.mxu0 0.0
    %1842 = vmatprep.subr.mxu0 0.0
    %1843 = vmatpush2.msra.mxu0 0.0
    %1844 = vmatprep.subr.mxu0 0.0
    %1845 = vmatpush2.msra.mxu0 0.0
    %1846 = vmatprep.mubr.f32.mxu0 0.0
    %1847 = vmatmul.mubr.f32.gmra.mxu0 %v1780
    %v1848 = vpop.f32.mrf.mxu0
    %v1849 = vadd.f32 0.0, %v1848
    %v1850 = vpop.f32.mrf.mxu0
    %1851 = vdwg.mxu0
    %v1852 = vadd.f32 %v1766, %v1849
    %s1853 = scalar_lea.vmem %s6, 880
    %v1854 = vld [vmem:[%s1853] sm:$0xff]
    %v1855 = vld [vmem:[%s1853 + $0x8] sm:$0xff]
    %v1856 = vld [vmem:[%s1853 + $0x10] sm:$0xff]
    %v1857 = vld [vmem:[%s1853 + $0x18] sm:$0xff]
    %v1858 = vld [vmem:[%s1853 + $0x20] sm:$0xff]
    %v1859 = vld [vmem:[%s1853 + $0x28] sm:$0xff]
    %v1860 = vld [vmem:[%s1853 + $0x30] sm:$0xff]
    %v1861 = vld [vmem:[%s1853 + $0x38] sm:$0xff]
    %v1862 = vld [vmem:[%s1853 + $0x40] sm:$0xff]
    %v1863 = vld [vmem:[%s1853 + $0x48] sm:$0xff]
    %v1864 = vld [vmem:[%s1853 + $0x50] sm:$0xff]
    %v1865 = vrot.slane %v994, 4
    %v1866 = vsel %vm1020, %v1865, 0
    %1868 = vmatprep.subr.mxu0 0.0
    %1869 = vmatpush1.msra.mxu0 0.0
    %1870 = vmatprep.subr.mxu0 0.0
    %1871 = vmatpush1.msra.mxu0 0.0
    %1872 = vmatprep.subr.mxu0 0.0
    %1873 = vmatpush1.msra.mxu0 0.0
    %1874 = vmatprep.subr.mxu0 0.0
    %1875 = vmatpush1.msra.mxu0 0.0
    %1876 = vmatprep.subr.mxu0 0.0
    %1877 = vmatpush1.msra.mxu0 0.0
    %1878 = vmatprep.subr.mxu0 0.0
    %1879 = vmatpush1.msra.mxu0 %v1864
    %1880 = vmatprep.subr.mxu0 0.0
    %1881 = vmatpush1.msra.mxu0 %v1863
    %1882 = vmatprep.subr.mxu0 0.0
    %1883 = vmatpush1.msra.mxu0 %v1862
    %1884 = vmatprep.subr.mxu0 0.0
    %1885 = vmatpush1.msra.mxu0 %v1861
    %1886 = vmatprep.subr.mxu0 0.0
    %1887 = vmatpush1.msra.mxu0 %v1860
    %1888 = vmatprep.subr.mxu0 0.0
    %1889 = vmatpush1.msra.mxu0 %v1859
    %1890 = vmatprep.subr.mxu0 0.0
    %1891 = vmatpush1.msra.mxu0 %v1858
    %1892 = vmatprep.subr.mxu0 0.0
    %1893 = vmatpush1.msra.mxu0 %v1857
    %1894 = vmatprep.subr.mxu0 0.0
    %1895 = vmatpush1.msra.mxu0 %v1856
    %1896 = vmatprep.subr.mxu0 0.0
    %1897 = vmatpush1.msra.mxu0 %v1855
    %1898 = vmatprep.subr.mxu0 0.0
    %1899 = vmatpush1.msra.mxu0 %v1854
    %1900 = vmatprep.subr.mxu0 0.0
    %1901 = vmatpush2.msra.mxu0 0.0
    %1902 = vmatprep.subr.mxu0 0.0
    %1903 = vmatpush2.msra.mxu0 0.0
    %1904 = vmatprep.subr.mxu0 0.0
    %1905 = vmatpush2.msra.mxu0 0.0
    %1906 = vmatprep.subr.mxu0 0.0
    %1907 = vmatpush2.msra.mxu0 0.0
    %1908 = vmatprep.subr.mxu0 0.0
    %1909 = vmatpush2.msra.mxu0 0.0
    %1910 = vmatprep.subr.mxu0 0.0
    %1911 = vmatpush2.msra.mxu0 0.0
    %1912 = vmatprep.subr.mxu0 0.0
    %1913 = vmatpush2.msra.mxu0 0.0
    %1914 = vmatprep.subr.mxu0 0.0
    %1915 = vmatpush2.msra.mxu0 0.0
    %1916 = vmatprep.subr.mxu0 0.0
    %1917 = vmatpush2.msra.mxu0 0.0
    %1918 = vmatprep.subr.mxu0 0.0
    %1919 = vmatpush2.msra.mxu0 0.0
    %1920 = vmatprep.subr.mxu0 0.0
    %1921 = vmatpush2.msra.mxu0 0.0
    %1922 = vmatprep.subr.mxu0 0.0
    %1923 = vmatpush2.msra.mxu0 0.0
    %1924 = vmatprep.subr.mxu0 0.0
    %1925 = vmatpush2.msra.mxu0 0.0
    %1926 = vmatprep.subr.mxu0 0.0
    %1927 = vmatpush2.msra.mxu0 0.0
    %1928 = vmatprep.subr.mxu0 0.0
    %1929 = vmatpush2.msra.mxu0 0.0
    %1930 = vmatprep.subr.mxu0 0.0
    %1931 = vmatpush2.msra.mxu0 0.0
    %1932 = vmatprep.mubr.f32.mxu0 0.0
    %1933 = vmatmul.mubr.f32.gmra.mxu0 %v1866
    %v1934 = vpop.f32.mrf.mxu0
    %v1935 = vadd.f32 0.0, %v1934
    %v1936 = vpop.f32.mrf.mxu0
    %1937 = vdwg.mxu0
    %v1938 = vadd.f32 %v1852, %v1935
    %v1939 = vld [vmem:[%s7] sm:$0x1]
    %v1941 = vlaneseq
    %v1942 = vshrl.u32 %v1941, 7
    %v1943 = vsub.s32 0, %v1942
    %v1944 = vrot.slane %v1939, %v1943
    %v1946 = vadd.f32 %v1938, %v1944
    %v1947 = vmax.f32 %v1946, 0.0
    %v1948 = vld [vmem:[%s1] sm:$0x3]
    %v1949 = vld [vmem:[%s8] sm:$0xff]
    %v1950 = vld [vmem:[%s9] sm:$0x1]
    %v1952 = vlaneseq
    %v1953 = vshrl.u32 %v1952, 7
    %v1954 = vsub.s32 0, %v1953
    %v1955 = vrot.slane %v1950, %v1954
    %vm1957 = vcmask 64512
    %v1959 = vsel %vm1957, %v1948, 0
    %1961 = vmatprep.subr.mxu0 0.0
    %1962 = vmatpush1.msra.mxu0 0.0
    %1963 = vmatprep.subr.mxu0 0.0
    %1964 = vmatpush1.msra.mxu0 0.0
    %1965 = vmatprep.subr.mxu0 0.0
    %1966 = vmatpush1.msra.mxu0 0.0
    %1967 = vmatprep.subr.mxu0 0.0
    %1968 = vmatpush1.msra.mxu0 0.0
    %1969 = vmatprep.subr.mxu0 0.0
    %1970 = vmatpush1.msra.mxu0 0.0
    %1971 = vmatprep.subr.mxu0 0.0
    %1972 = vmatpush1.msra.mxu0 0.0
    %1973 = vmatprep.subr.mxu0 0.0
    %1974 = vmatpush1.msra.mxu0 0.0
    %1975 = vmatprep.subr.mxu0 0.0
    %1976 = vmatpush1.msra.mxu0 0.0
    %1977 = vmatprep.subr.mxu0 0.0
    %1978 = vmatpush1.msra.mxu0 0.0
    %1979 = vmatprep.subr.mxu0 0.0
    %1980 = vmatpush1.msra.mxu0 0.0
    %1981 = vmatprep.subr.mxu0 0.0
    %1982 = vmatpush1.msra.mxu0 0.0
    %1983 = vmatprep.subr.mxu0 0.0
    %1984 = vmatpush1.msra.mxu0 0.0
    %1985 = vmatprep.subr.mxu0 0.0
    %1986 = vmatpush1.msra.mxu0 0.0
    %1987 = vmatprep.subr.mxu0 0.0
    %1988 = vmatpush1.msra.mxu0 0.0
    %1989 = vmatprep.subr.mxu0 0.0
    %1990 = vmatpush1.msra.mxu0 0.0
    %1991 = vmatprep.subr.mxu0 0.0
    %1992 = vmatpush1.msra.mxu0 %v1949
    %1993 = vmatprep.subr.mxu0 0.0
    %1994 = vmatpush2.msra.mxu0 0.0
    %1995 = vmatprep.subr.mxu0 0.0
    %1996 = vmatpush2.msra.mxu0 0.0
    %1997 = vmatprep.subr.mxu0 0.0
    %1998 = vmatpush2.msra.mxu0 0.0
    %1999 = vmatprep.subr.mxu0 0.0
    %2000 = vmatpush2.msra.mxu0 0.0
    %2001 = vmatprep.subr.mxu0 0.0
    %2002 = vmatpush2.msra.mxu0 0.0
    %2003 = vmatprep.subr.mxu0 0.0
    %2004 = vmatpush2.msra.mxu0 0.0
    %2005 = vmatprep.subr.mxu0 0.0
    %2006 = vmatpush2.msra.mxu0 0.0
    %2007 = vmatprep.subr.mxu0 0.0
    %2008 = vmatpush2.msra.mxu0 0.0
    %2009 = vmatprep.subr.mxu0 0.0
    %2010 = vmatpush2.msra.mxu0 0.0
    %2011 = vmatprep.subr.mxu0 0.0
    %2012 = vmatpush2.msra.mxu0 0.0
    %2013 = vmatprep.subr.mxu0 0.0
    %2014 = vmatpush2.msra.mxu0 0.0
    %2015 = vmatprep.subr.mxu0 0.0
    %2016 = vmatpush2.msra.mxu0 0.0
    %2017 = vmatprep.subr.mxu0 0.0
    %2018 = vmatpush2.msra.mxu0 0.0
    %2019 = vmatprep.subr.mxu0 0.0
    %2020 = vmatpush2.msra.mxu0 0.0
    %2021 = vmatprep.subr.mxu0 0.0
    %2022 = vmatpush2.msra.mxu0 0.0
    %2023 = vmatprep.subr.mxu0 0.0
    %2024 = vmatpush2.msra.mxu0 0.0
    %2025 = vmatprep.mubr.f32.mxu0 0.0
    %2026 = vmatmul.mubr.f32.gmra.mxu0 %v1959
    %v2027 = vpop.f32.mrf.mxu0
    %v2028 = vadd.f32 %v1955, %v2027
    %v2029 = vpop.f32.mrf.mxu0
    %2030 = vdwg.mxu0
    %v2031 = vmax.f32 %v2028, 0.0
    %v2032 = vld [vmem:[%s10] sm:$0xff]
    %v2033 = vld [vmem:[%s10 + $0x8] sm:$0xff]
    %v2034 = vld [vmem:[%s10 + $0x10] sm:$0xff]
    %v2035 = vld [vmem:[%s10 + $0x18] sm:$0xff]
    %v2036 = vld [vmem:[%s10 + $0x20] sm:$0xff]
    %v2037 = vld [vmem:[%s10 + $0x28] sm:$0xff]
    %v2038 = vld [vmem:[%s10 + $0x30] sm:$0xff]
    %v2039 = vld [vmem:[%s10 + $0x38] sm:$0xff]
    %v2040 = vld [vmem:[%s11] sm:$0xff]
    %v2041 = vld [vmem:[%s11 + $0x8] sm:$0xff]
    %v2042 = vld [vmem:[%s11 + $0x10] sm:$0xff]
    %v2043 = vld [vmem:[%s11 + $0x18] sm:$0xff]
    %v2044 = vld [vmem:[%s11 + $0x20] sm:$0xff]
    %v2045 = vld [vmem:[%s11 + $0x28] sm:$0xff]
    %v2046 = vld [vmem:[%s11 + $0x30] sm:$0xff]
    %v2047 = vld [vmem:[%s11 + $0x38] sm:$0xff]
    %vm2048 = vcmask 523264
    %v2050 = vsel %vm2048, %v1947, 0
    %2052 = vmatprep.subr.mxu0 0.0
    %2053 = vmatpush1.msra.mxu0 0.0
    %2054 = vmatprep.subr.mxu0 0.0
    %2055 = vmatpush1.msra.mxu0 0.0
    %2056 = vmatprep.subr.mxu0 0.0
    %2057 = vmatpush1.msra.mxu0 0.0
    %2058 = vmatprep.subr.mxu0 0.0
    %2059 = vmatpush1.msra.mxu0 0.0
    %2060 = vmatprep.subr.mxu0 0.0
    %2061 = vmatpush1.msra.mxu0 0.0
    %2062 = vmatprep.subr.mxu0 0.0
    %2063 = vmatpush1.msra.mxu0 0.0
    %2064 = vmatprep.subr.mxu0 0.0
    %2065 = vmatpush1.msra.mxu0 0.0
    %2066 = vmatprep.subr.mxu0 0.0
    %2067 = vmatpush1.msra.mxu0 0.0
    %2068 = vmatprep.subr.mxu0 0.0
    %2069 = vmatpush1.msra.mxu0 %v2047
    %2070 = vmatprep.subr.mxu0 0.0
    %2071 = vmatpush1.msra.mxu0 %v2046
    %2072 = vmatprep.subr.mxu0 0.0
    %2073 = vmatpush1.msra.mxu0 %v2045
    %2074 = vmatprep.subr.mxu0 0.0
    %2075 = vmatpush1.msra.mxu0 %v2044
    %2076 = vmatprep.subr.mxu0 0.0
    %2077 = vmatpush1.msra.mxu0 %v2043
    %2078 = vmatprep.subr.mxu0 0.0
    %2079 = vmatpush1.msra.mxu0 %v2042
    %2080 = vmatprep.subr.mxu0 0.0
    %2081 = vmatpush1.msra.mxu0 %v2041
    %2082 = vmatprep.subr.mxu0 0.0
    %2083 = vmatpush1.msra.mxu0 %v2040
    %2084 = vmatprep.subr.mxu0 0.0
    %2085 = vmatpush2.msra.mxu0 0.0
    %2086 = vmatprep.subr.mxu0 0.0
    %2087 = vmatpush2.msra.mxu0 0.0
    %2088 = vmatprep.subr.mxu0 0.0
    %2089 = vmatpush2.msra.mxu0 0.0
    %2090 = vmatprep.subr.mxu0 0.0
    %2091 = vmatpush2.msra.mxu0 0.0
    %2092 = vmatprep.subr.mxu0 0.0
    %2093 = vmatpush2.msra.mxu0 0.0
    %2094 = vmatprep.subr.mxu0 0.0
    %2095 = vmatpush2.msra.mxu0 0.0
    %2096 = vmatprep.subr.mxu0 0.0
    %2097 = vmatpush2.msra.mxu0 0.0
    %2098 = vmatprep.subr.mxu0 0.0
    %2099 = vmatpush2.msra.mxu0 0.0
    %2100 = vmatprep.subr.mxu0 0.0
    %2101 = vmatpush2.msra.mxu0 0.0
    %2102 = vmatprep.subr.mxu0 0.0
    %2103 = vmatpush2.msra.mxu0 0.0
    %2104 = vmatprep.subr.mxu0 0.0
    %2105 = vmatpush2.msra.mxu0 0.0
    %2106 = vmatprep.subr.mxu0 0.0
    %2107 = vmatpush2.msra.mxu0 0.0
    %2108 = vmatprep.subr.mxu0 0.0
    %2109 = vmatpush2.msra.mxu0 0.0
    %2110 = vmatprep.subr.mxu0 0.0
    %2111 = vmatpush2.msra.mxu0 0.0
    %2112 = vmatprep.subr.mxu0 0.0
    %2113 = vmatpush2.msra.mxu0 0.0
    %2114 = vmatprep.subr.mxu0 0.0
    %2115 = vmatpush2.msra.mxu0 0.0
    %2116 = vmatprep.mubr.f32.mxu0 0.0
    %2117 = vmatmul.mubr.f32.gmra.mxu0 %v2050
    %v2118 = vpop.f32.mrf.mxu0
    %v2119 = vadd.f32 0.0, %v2118
    %v2120 = vpop.f32.mrf.mxu0
    %2121 = vdwg.mxu0
    %v2123 = vsel %vm2048, %v2031, 0
    %2125 = vmatprep.subr.mxu0 0.0
    %2126 = vmatpush1.msra.mxu0 0.0
    %2127 = vmatprep.subr.mxu0 0.0
    %2128 = vmatpush1.msra.mxu0 0.0
    %2129 = vmatprep.subr.mxu0 0.0
    %2130 = vmatpush1.msra.mxu0 0.0
    %2131 = vmatprep.subr.mxu0 0.0
    %2132 = vmatpush1.msra.mxu0 0.0
    %2133 = vmatprep.subr.mxu0 0.0
    %2134 = vmatpush1.msra.mxu0 0.0
    %2135 = vmatprep.subr.mxu0 0.0
    %2136 = vmatpush1.msra.mxu0 0.0
    %2137 = vmatprep.subr.mxu0 0.0
    %2138 = vmatpush1.msra.mxu0 0.0
    %2139 = vmatprep.subr.mxu0 0.0
    %2140 = vmatpush1.msra.mxu0 0.0
    %2141 = vmatprep.subr.mxu0 0.0
    %2142 = vmatpush1.msra.mxu0 %v2039
    %2143 = vmatprep.subr.mxu0 0.0
    %2144 = vmatpush1.msra.mxu0 %v2038
    %2145 = vmatprep.subr.mxu0 0.0
    %2146 = vmatpush1.msra.mxu0 %v2037
    %2147 = vmatprep.subr.mxu0 0.0
    %2148 = vmatpush1.msra.mxu0 %v2036
    %2149 = vmatprep.subr.mxu0 0.0
    %2150 = vmatpush1.msra.mxu0 %v2035
    %2151 = vmatprep.subr.mxu0 0.0
    %2152 = vmatpush1.msra.mxu0 %v2034
    %2153 = vmatprep.subr.mxu0 0.0
    %2154 = vmatpush1.msra.mxu0 %v2033
    %2155 = vmatprep.subr.mxu0 0.0
    %2156 = vmatpush1.msra.mxu0 %v2032
    %2157 = vmatprep.subr.mxu0 0.0
    %2158 = vmatpush2.msra.mxu0 0.0
    %2159 = vmatprep.subr.mxu0 0.0
    %2160 = vmatpush2.msra.mxu0 0.0
    %2161 = vmatprep.subr.mxu0 0.0
    %2162 = vmatpush2.msra.mxu0 0.0
    %2163 = vmatprep.subr.mxu0 0.0
    %2164 = vmatpush2.msra.mxu0 0.0
    %2165 = vmatprep.subr.mxu0 0.0
    %2166 = vmatpush2.msra.mxu0 0.0
    %2167 = vmatprep.subr.mxu0 0.0
    %2168 = vmatpush2.msra.mxu0 0.0
    %2169 = vmatprep.subr.mxu0 0.0
    %2170 = vmatpush2.msra.mxu0 0.0
    %2171 = vmatprep.subr.mxu0 0.0
    %2172 = vmatpush2.msra.mxu0 0.0
    %2173 = vmatprep.subr.mxu0 0.0
    %2174 = vmatpush2.msra.mxu0 0.0
    %2175 = vmatprep.subr.mxu0 0.0
    %2176 = vmatpush2.msra.mxu0 0.0
    %2177 = vmatprep.subr.mxu0 0.0
    %2178 = vmatpush2.msra.mxu0 0.0
    %2179 = vmatprep.subr.mxu0 0.0
    %2180 = vmatpush2.msra.mxu0 0.0
    %2181 = vmatprep.subr.mxu0 0.0
    %2182 = vmatpush2.msra.mxu0 0.0
    %2183 = vmatprep.subr.mxu0 0.0
    %2184 = vmatpush2.msra.mxu0 0.0
    %2185 = vmatprep.subr.mxu0 0.0
    %2186 = vmatpush2.msra.mxu0 0.0
    %2187 = vmatprep.subr.mxu0 0.0
    %2188 = vmatpush2.msra.mxu0 0.0
    %2189 = vmatprep.mubr.f32.mxu0 0.0
    %2190 = vmatmul.mubr.f32.gmra.mxu0 %v2123
    %v2191 = vpop.f32.mrf.mxu0
    %v2192 = vadd.f32 %v2119, %v2191
    %v2193 = vpop.f32.mrf.mxu0
    %2194 = vdwg.mxu0
    %v2195 = vld [vmem:[%s12] sm:$0x1]
    %v2197 = vlaneseq
    %v2198 = vshrl.u32 %v2197, 7
    %v2199 = vsub.s32 0, %v2198
    %v2200 = vrot.slane %v2195, %v2199
    %v2202 = vadd.f32 %v2192, %v2200
    %v2203 = vmax.f32 %v2202, 0.0
    %v2204 = vld [vmem:[%s13] sm:$0xff]
    %v2205 = vld [vmem:[%s13 + $0x8] sm:$0xff]
    %v2206 = vld [vmem:[%s13 + $0x10] sm:$0xff]
    %v2207 = vld [vmem:[%s13 + $0x18] sm:$0xff]
    %v2208 = vld [vmem:[%s13 + $0x20] sm:$0xff]
    %v2209 = vld [vmem:[%s13 + $0x28] sm:$0xff]
    %v2210 = vld [vmem:[%s13 + $0x30] sm:$0xff]
    %v2211 = vld [vmem:[%s13 + $0x38] sm:$0xff]
    %v2212 = vld [vmem:[%s14] sm:$0x1]
    %v2214 = vlaneseq
    %v2215 = vshrl.u32 %v2214, 7
    %v2216 = vsub.s32 0, %v2215
    %v2217 = vrot.slane %v2212, %v2216
    %v2220 = vsel %vm2048, %v2203, 0
    %2222 = vmatprep.subr.mxu0 0.0
    %2223 = vmatpush1.msra.mxu0 0.0
    %2224 = vmatprep.subr.mxu0 0.0
    %2225 = vmatpush1.msra.mxu0 0.0
    %2226 = vmatprep.subr.mxu0 0.0
    %2227 = vmatpush1.msra.mxu0 0.0
    %2228 = vmatprep.subr.mxu0 0.0
    %2229 = vmatpush1.msra.mxu0 0.0
    %2230 = vmatprep.subr.mxu0 0.0
    %2231 = vmatpush1.msra.mxu0 0.0
    %2232 = vmatprep.subr.mxu0 0.0
    %2233 = vmatpush1.msra.mxu0 0.0
    %2234 = vmatprep.subr.mxu0 0.0
    %2235 = vmatpush1.msra.mxu0 0.0
    %2236 = vmatprep.subr.mxu0 0.0
    %2237 = vmatpush1.msra.mxu0 0.0
    %2238 = vmatprep.subr.mxu0 0.0
    %2239 = vmatpush1.msra.mxu0 %v2211
    %2240 = vmatprep.subr.mxu0 0.0
    %2241 = vmatpush1.msra.mxu0 %v2210
    %2242 = vmatprep.subr.mxu0 0.0
    %2243 = vmatpush1.msra.mxu0 %v2209
    %2244 = vmatprep.subr.mxu0 0.0
    %2245 = vmatpush1.msra.mxu0 %v2208
    %2246 = vmatprep.subr.mxu0 0.0
    %2247 = vmatpush1.msra.mxu0 %v2207
    %2248 = vmatprep.subr.mxu0 0.0
    %2249 = vmatpush1.msra.mxu0 %v2206
    %2250 = vmatprep.subr.mxu0 0.0
    %2251 = vmatpush1.msra.mxu0 %v2205
    %2252 = vmatprep.subr.mxu0 0.0
    %2253 = vmatpush1.msra.mxu0 %v2204
    %2254 = vmatprep.subr.mxu0 0.0
    %2255 = vmatpush2.msra.mxu0 0.0
    %2256 = vmatprep.subr.mxu0 0.0
    %2257 = vmatpush2.msra.mxu0 0.0
    %2258 = vmatprep.subr.mxu0 0.0
    %2259 = vmatpush2.msra.mxu0 0.0
    %2260 = vmatprep.subr.mxu0 0.0
    %2261 = vmatpush2.msra.mxu0 0.0
    %2262 = vmatprep.subr.mxu0 0.0
    %2263 = vmatpush2.msra.mxu0 0.0
    %2264 = vmatprep.subr.mxu0 0.0
    %2265 = vmatpush2.msra.mxu0 0.0
    %2266 = vmatprep.subr.mxu0 0.0
    %2267 = vmatpush2.msra.mxu0 0.0
    %2268 = vmatprep.subr.mxu0 0.0
    %2269 = vmatpush2.msra.mxu0 0.0
    %2270 = vmatprep.subr.mxu0 0.0
    %2271 = vmatpush2.msra.mxu0 0.0
    %2272 = vmatprep.subr.mxu0 0.0
    %2273 = vmatpush2.msra.mxu0 0.0
    %2274 = vmatprep.subr.mxu0 0.0
    %2275 = vmatpush2.msra.mxu0 0.0
    %2276 = vmatprep.subr.mxu0 0.0
    %2277 = vmatpush2.msra.mxu0 0.0
    %2278 = vmatprep.subr.mxu0 0.0
    %2279 = vmatpush2.msra.mxu0 0.0
    %2280 = vmatprep.subr.mxu0 0.0
    %2281 = vmatpush2.msra.mxu0 0.0
    %2282 = vmatprep.subr.mxu0 0.0
    %2283 = vmatpush2.msra.mxu0 0.0
    %2284 = vmatprep.subr.mxu0 0.0
    %2285 = vmatpush2.msra.mxu0 0.0
    %2286 = vmatprep.mubr.f32.mxu0 0.0
    %2287 = vmatmul.mubr.f32.gmra.mxu0 %v2220
    %v2288 = vpop.f32.mrf.mxu0
    %v2289 = vadd.f32 %v2217, %v2288
    %v2290 = vpop.f32.mrf.mxu0
    %2291 = vdwg.mxu0
    %v2292 = vmax.f32 %v2289, 0.0
    %v2293 = vld [vmem:[%s15] sm:$0xff]
    %v2294 = vld [vmem:[%s15 + $0x8] sm:$0xff]
    %v2295 = vld [vmem:[%s15 + $0x10] sm:$0xff]
    %v2296 = vld [vmem:[%s15 + $0x18] sm:$0xff]
    %v2297 = vld [vmem:[%s16] sm:$0x1]
    %v2299 = vlaneseq
    %v2300 = vshrl.u32 %v2299, 7
    %v2301 = vsub.s32 0, %v2300
    %v2302 = vrot.slane %v2297, %v2301
    %vm2304 = vcmask 261120
    %v2306 = vsel %vm2304, %v2292, 0
    %2308 = vmatprep.subr.mxu0 0.0
    %2309 = vmatpush1.msra.mxu0 0.0
    %2310 = vmatprep.subr.mxu0 0.0
    %2311 = vmatpush1.msra.mxu0 0.0
    %2312 = vmatprep.subr.mxu0 0.0
    %2313 = vmatpush1.msra.mxu0 0.0
    %2314 = vmatprep.subr.mxu0 0.0
    %2315 = vmatpush1.msra.mxu0 0.0
    %2316 = vmatprep.subr.mxu0 0.0
    %2317 = vmatpush1.msra.mxu0 0.0
    %2318 = vmatprep.subr.mxu0 0.0
    %2319 = vmatpush1.msra.mxu0 0.0
    %2320 = vmatprep.subr.mxu0 0.0
    %2321 = vmatpush1.msra.mxu0 0.0
    %2322 = vmatprep.subr.mxu0 0.0
    %2323 = vmatpush1.msra.mxu0 0.0
    %2324 = vmatprep.subr.mxu0 0.0
    %2325 = vmatpush1.msra.mxu0 0.0
    %2326 = vmatprep.subr.mxu0 0.0
    %2327 = vmatpush1.msra.mxu0 0.0
    %2328 = vmatprep.subr.mxu0 0.0
    %2329 = vmatpush1.msra.mxu0 0.0
    %2330 = vmatprep.subr.mxu0 0.0
    %2331 = vmatpush1.msra.mxu0 0.0
    %2332 = vmatprep.subr.mxu0 0.0
    %2333 = vmatpush1.msra.mxu0 %v2296
    %2334 = vmatprep.subr.mxu0 0.0
    %2335 = vmatpush1.msra.mxu0 %v2295
    %2336 = vmatprep.subr.mxu0 0.0
    %2337 = vmatpush1.msra.mxu0 %v2294
    %2338 = vmatprep.subr.mxu0 0.0
    %2339 = vmatpush1.msra.mxu0 %v2293
    %2340 = vmatprep.subr.mxu0 0.0
    %2341 = vmatpush2.msra.mxu0 0.0
    %2342 = vmatprep.subr.mxu0 0.0
    %2343 = vmatpush2.msra.mxu0 0.0
    %2344 = vmatprep.subr.mxu0 0.0
    %2345 = vmatpush2.msra.mxu0 0.0
    %2346 = vmatprep.subr.mxu0 0.0
    %2347 = vmatpush2.msra.mxu0 0.0
    %2348 = vmatprep.subr.mxu0 0.0
    %2349 = vmatpush2.msra.mxu0 0.0
    %2350 = vmatprep.subr.mxu0 0.0
    %2351 = vmatpush2.msra.mxu0 0.0
    %2352 = vmatprep.subr.mxu0 0.0
    %2353 = vmatpush2.msra.mxu0 0.0
    %2354 = vmatprep.subr.mxu0 0.0
    %2355 = vmatpush2.msra.mxu0 0.0
    %2356 = vmatprep.subr.mxu0 0.0
    %2357 = vmatpush2.msra.mxu0 0.0
    %2358 = vmatprep.subr.mxu0 0.0
    %2359 = vmatpush2.msra.mxu0 0.0
    %2360 = vmatprep.subr.mxu0 0.0
    %2361 = vmatpush2.msra.mxu0 0.0
    %2362 = vmatprep.subr.mxu0 0.0
    %2363 = vmatpush2.msra.mxu0 0.0
    %2364 = vmatprep.subr.mxu0 0.0
    %2365 = vmatpush2.msra.mxu0 0.0
    %2366 = vmatprep.subr.mxu0 0.0
    %2367 = vmatpush2.msra.mxu0 0.0
    %2368 = vmatprep.subr.mxu0 0.0
    %2369 = vmatpush2.msra.mxu0 0.0
    %2370 = vmatprep.subr.mxu0 0.0
    %2371 = vmatpush2.msra.mxu0 0.0
    %2372 = vmatprep.mubr.f32.mxu0 0.0
    %2373 = vmatmul.mubr.f32.gmra.mxu0 %v2306
    %v2374 = vpop.f32.mrf.mxu0
    %v2375 = vadd.f32 %v2302, %v2374
    %v2376 = vpop.f32.mrf.mxu0
    %2377 = vdwg.mxu0
    %v2378 = vtanh.pop %v2375
    %vm2379 = vcmask 9216
    %2380 = vst.msk [vmem:[#allocation2] sm:$0x3] %vm2379, %v2378
    // Predicated region
    $region70: #{actor_forward.1} parent=1 // pred_check
      _
    $region71: #{actor_forward.1} parent=1 // pred_check_branch
      %2382 = sbr.rel (0) target = $region73
    $region72: #{actor_forward.1} parent=1 // pred_region
      %s2384 = ssub.s32 32, 32
      %2385 = vsyncadd [#allocation3], %s2384
      %s2387 = sshll.u32 [#allocation2], 4
      %s2388 = int_to_ptr.vmem [resolvable:$true] %s2387
      %2390 = dma.vmem_to_hbm [thread:$0]  %s2388, 32, %s17, [#allocation3]
    $region73: #{actor_forward.1} parent=1 // pred_fallthru
      _
    // Predicated region
    $region74: #{actor_forward.1} parent=1 // pred_check
      _
    $region75: #{actor_forward.1} parent=1 // pred_check_branch
      %2392 = sbr.rel (0) target = $region77
    $region76: #{actor_forward.1} parent=1 // pred_region
      %2393 = dma.done [#allocation3], 32
    $region77: #{actor_forward.1} parent=1 // pred_fallthru
      _
    %2394 = vsyncpa [#allocation3], 1

</llo_original>
